<compile_context>
chip_gen: v6e
topology: v6e:2x2x1
jax: 0.10.0
libtpu: 0.0.40
codegen_flags: <defaults>
</compile_context>

<pallas_src>
import numpy as np
import jax
import jax.numpy as jnp
from jax.experimental import pallas as pl
from jax.experimental.pallas import tpu as pltpu

NUM_BETA = 100
NUM_BETA_PAD = 104     # padded to a multiple of 8 sublanes (aligned MXU contraction)
NUM_JOINTS = 24
V = 1024               # synthetic vertex count (real RaBit mesh is larger; kept small)
B = 2


def _lane_tile(total, max_tile=8192):
    """Largest multiple of 128 that divides `total` and is <= max_tile (else full)."""
    if total <= max_tile:
        return total
    t = max_tile - (max_tile % 128)
    while t >= 128:
        if total % t == 0:
            return t
        t -= 128
    return total


# --------------------------------------------------------------------------
# Pallas kernel 1: shape blendshape matmul (computed ONCE — the reference
# broadcasts a single beta vector across the batch), lane-major output.
#   out[0, c*V + v] = sum_k beta[0,k] * shapedirs_cv[k, c*V + v] + v_template_cv[0, c*V + v]
# --------------------------------------------------------------------------
def _blend_kernel(beta_ref, sd_ref, vt_ref, out_ref):
    out_ref[...] = jnp.dot(beta_ref[...], sd_ref[...],
                           preferred_element_type=jnp.float32) + vt_ref[...]


def blend_shapes(beta_1k, shapedirs_cv, v_template_cv):
    K, N = shapedirs_cv.shape
    tn = _lane_tile(N)
    return pl.pallas_call(
        _blend_kernel,
        out_shape=jax.ShapeDtypeStruct((1, N), jnp.float32),
        grid_spec=pltpu.PrefetchScalarGridSpec(
            num_scalar_prefetch=0,
            grid=(N // tn,),
            in_specs=[
                pl.BlockSpec((1, K), lambda i: (0, 0)),     # resident across tiles
                pl.BlockSpec((K, tn), lambda i: (0, i)),
                pl.BlockSpec((1, tn), lambda i: (0, i)),
            ],
            out_specs=pl.BlockSpec((1, tn), lambda i: (0, i)),
        ),
        compiler_params=pltpu.CompilerParams(
            dimension_semantics=("parallel",)),
        cost_estimate=pl.CostEstimate(
            flops=2 * K * N,
            transcendentals=0,
            bytes_accessed=4 * (K * N + 2 * N + K)),
    )(beta_1k, shapedirs_cv, v_template_cv)


# --------------------------------------------------------------------------
# Pallas kernel 2: linear blend skinning as a single MXU dot, batch folded
# into the M dimension, vertices lane-parallel.
#   WX[c*J + j, v]     = weights_T[j, v] * pos_h[c, v]   (c==3 row group is W itself)
#   out[b*3 + r, v]    = sum_{c,j} Gflat[b*3 + r, c*J + j] * WX[c*J + j, v]
# --------------------------------------------------------------------------
def _skin_kernel(g_ref, w_ref, pos_ref, o_ref):
    w = w_ref[...]                                    # (J, TN)
    wx = jnp.concatenate(
        [w * pos_ref[0:1, :],                         # x-weighted rows   (J, TN)
         w * pos_ref[1:2, :],                         # y-weighted rows
         w * pos_ref[2:3, :],                         # z-weighted rows
         w],                                          # homogeneous-1 rows
        axis=0)                                       # (4J = 96, TN)
    o_ref[...] = jnp.dot(g_ref[...], wx, preferred_element_type=jnp.float32)


def lbs_skin(g_flat, weights_T, pos_cv):
    M = g_flat.shape[0]                               # 3 * B
    Jj, Vv = weights_T.shape
    tn = _lane_tile(Vv)
    return pl.pallas_call(
        _skin_kernel,
        out_shape=jax.ShapeDtypeStruct((M, Vv), jnp.float32),
        grid_spec=pltpu.PrefetchScalarGridSpec(
            num_scalar_prefetch=0,
            grid=(Vv // tn,),
            in_specs=[
                pl.BlockSpec((M, 4 * Jj), lambda i: (0, 0)),   # resident across tiles
                pl.BlockSpec((Jj, tn), lambda i: (0, i)),
                pl.BlockSpec((3, tn), lambda i: (0, i)),
            ],
            out_specs=pl.BlockSpec((M, tn), lambda i: (0, i)),
        ),
        compiler_params=pltpu.CompilerParams(
            dimension_semantics=("parallel",)),
        cost_estimate=pl.CostEstimate(
            flops=2 * M * 4 * Jj * Vv + 3 * Jj * Vv,
            transcendentals=0,
            bytes_accessed=4 * (M * 4 * Jj + Jj * Vv + 3 * Vv + M * Vv)),
    )(g_flat, weights_T, pos_cv)


# --------------------------------------------------------------------------
# JAX glue: rodrigues (small tensors, 24 joints)
# --------------------------------------------------------------------------
def rodrigues(r):
    # r: (B, 24, 3)
    Bb, J = r.shape[0], r.shape[1]
    theta = jnp.linalg.norm(r, axis=2, keepdims=True)
    theta = jnp.maximum(theta, 1e-6)
    r_hat = r / theta
    z = jnp.zeros((Bb, J, 1), jnp.float32)
    m = jnp.concatenate(
        [z, -r_hat[:, :, 2:3], r_hat[:, :, 1:2],
         r_hat[:, :, 2:3], z, -r_hat[:, :, 0:1],
         -r_hat[:, :, 1:2], r_hat[:, :, 0:1], z], axis=2).reshape(Bb, J, 3, 3)
    i_cube = jnp.broadcast_to(jnp.eye(3, dtype=jnp.float32), (J, 3, 3))
    r_hat_c = r_hat[..., None]                        # (B, J, 3, 1)
    r_hat_M = r_hat_c @ jnp.swapaxes(r_hat_c, 3, 2)   # (B, J, 3, 3)
    cos = jnp.cos(theta)[:, :, :, None]
    sin = jnp.sin(theta)[:, :, :, None]
    return cos * i_cube + (1.0 - cos) * r_hat_M + sin * m


class RabitModelEye:
    """JAX/Pallas re-implementation of RabitModel_eye.forward (beta_norm=False,
    theta_norm=False).  All parameters are synthesized deterministically."""

    def __init__(self):
        rng = np.random.default_rng(0)
        # Original shapedirs columns are flattened as (vertex, coord), i.e. 3*v + c.
        # Pre-permute OFFLINE to coord-major (c*V + v) so the blend output reshapes
        # for free to the lane-major (3, V) layout; pad beta rows 100 -> 104.
        sd_vc = rng.standard_normal((NUM_BETA, 3 * V)).astype(np.float32) * 0.01
        sd_cv = sd_vc.reshape(NUM_BETA, V, 3).transpose(0, 2, 1).reshape(NUM_BETA, 3 * V)
        sd_pad = np.zeros((NUM_BETA_PAD, 3 * V), np.float32)
        sd_pad[:NUM_BETA] = sd_cv
        self.shapedirs_cv = jnp.asarray(sd_pad)                     # (104, 3V)
        vt = rng.standard_normal((V, 3)).astype(np.float32) * 0.5
        self.v_template_cv = jnp.asarray(
            np.ascontiguousarray(vt.T).reshape(1, 3 * V))           # (1, 3V)
        # skinning weights stored transposed (J, V) so vertices sit on lanes
        w_raw = rng.standard_normal((V, NUM_JOINTS)).astype(np.float32)
        w_exp = np.exp(w_raw - w_raw.max(axis=1, keepdims=True))
        w = w_exp / w_exp.sum(axis=1, keepdims=True)
        self.weights_T = jnp.asarray(np.ascontiguousarray(w.T))     # (24, V)
        # kinematic tree (parent[i] < i, parent[0] = -1), SMPL-style
        self.parent = np.array([-1, 0, 0, 0, 1, 2, 3, 4, 5, 6, 7, 8, 9, 9, 9,
                                12, 13, 14, 16, 17, 18, 19, 20, 21], dtype=np.int64)
        self.parent_idx = np.where(self.parent < 0, 0, self.parent).astype(np.int32)
        # level-scheduled forward kinematics: joints grouped by depth (static, offline)
        depth = np.zeros(NUM_JOINTS, np.int32)
        for i in range(1, NUM_JOINTS):
            depth[i] = depth[self.parent[i]] + 1
        self.fk_levels = []
        for d in range(1, int(depth.max()) + 1):
            idx = np.where(depth == d)[0].astype(np.int32)
            self.fk_levels.append((idx, self.parent[idx].astype(np.int32)))
        # joint2index surrogate: 32 vertex ids per non-root joint (index 0 = RootNode)
        self.joint_vertex_idx = jnp.asarray(
            rng.integers(0, V, size=(NUM_JOINTS - 1, 32)).astype(np.int32))
        # additional_7kp_index surrogate: 7 sets of 16 vertex ids
        self.add_kp_idx = jnp.asarray(
            rng.integers(0, V, size=(7, 16)).astype(np.int32))
        # rabit_params (as set in init_params)
        self.scale = jnp.float32(2.0)
        self.offset = jnp.zeros((NUM_JOINTS, 3), jnp.float32)

        self._forward = jax.jit(self._forward_impl)

    # ------------------------------------------------------------------
    def _forward_impl(self, beta, pose, trans):
        pose = pose.reshape(pose.shape[0], -1, 3)             # (B, 24, 3)
        Bb = pose.shape[0]

        # ---- update_Tpose_whole: Pallas kernel 1, computed ONCE (reference
        #      model broadcasts a single beta vector across the batch)
        beta_pad = jnp.zeros((1, NUM_BETA_PAD), jnp.float32)
        beta_pad = beta_pad.at[0, :NUM_BETA].set(beta.reshape(-1))
        pos_cv = blend_shapes(beta_pad, self.shapedirs_cv,
                              self.v_template_cv).reshape(3, V)   # (3, V) lane-major

        # ---- joint regression (shared across batch): (max+min)/2 over clusters
        gathered = pos_cv[:, self.joint_vertex_idx]           # (3, 23, 32)
        Jrest = ((gathered.max(axis=2) + gathered.min(axis=2)) * 0.5).T  # (23, 3)
        Jt = jnp.concatenate(
            [jnp.zeros((1, 3), jnp.float32), Jrest], axis=0)  # (24, 3)

        # ---- rodrigues + level-scheduled forward kinematics (depth <= 8)
        R = rodrigues(pose)                                   # (B, 24, 3, 3)
        dJ = Jt - Jt[self.parent_idx]                         # (24, 3); root row is 0
        trans_col = jnp.broadcast_to(dJ[None, :, :, None], (Bb, NUM_JOINTS, 3, 1))
        top = jnp.concatenate([R, trans_col], axis=3)         # (B, 24, 3, 4)
        bottom = jnp.broadcast_to(
            jnp.array([0.0, 0.0, 0.0, 1.0], jnp.float32)[None, None, None, :],
            (Bb, NUM_JOINTS, 1, 4))
        G_local = jnp.concatenate([top, bottom], axis=2)      # (B, 24, 4, 4)

        G = jnp.zeros((Bb, NUM_JOINTS, 4, 4), jnp.float32).at[:, 0].set(G_local[:, 0])
        for idx, pidx in self.fk_levels:                      # static Python loop, ~8 levels
            Gi = jnp.einsum('blrk,blkc->blrc', G[:, pidx], G_local[:, idx])
            G = G.at[:, idx].set(Gi)

        Jh = jnp.concatenate(
            [Jt, jnp.zeros((NUM_JOINTS, 1), jnp.float32)], axis=1)   # (24, 4)
        GJ = jnp.einsum('bjrc,jc->bjr', G, Jh)                # (B, 24, 4)
        G1 = jnp.concatenate([G[..., :3], (G[..., 3] - GJ)[..., None]], axis=-1)

        # Gflat[b*3 + r, c*J + j] = G1[b, j, r, c]  (matches WX row ordering)
        g_flat = jnp.transpose(G1[:, :, :3, :], (0, 2, 3, 1)).reshape(
            3 * Bb, 4 * NUM_JOINTS)                           # (3B, 96)

        # ---- linear blend skinning: Pallas kernel 2, one (3B,96)x(96,V) MXU dot
        posed_cv = lbs_skin(g_flat, self.weights_T, pos_cv).reshape(Bb, 3, V)

        # ---- scale about centroid, translate (still lane-major)
        center_cv = posed_cv.mean(axis=2, keepdims=True)      # (B, 3, 1)
        posed_cv = self.scale * (posed_cv - center_cv) + center_cv + trans[:, :, None]

        center_j = jnp.swapaxes(center_cv, 1, 2)              # (B, 1, 3)
        trans_j = trans[:, None, :]                           # (B, 1, 3)
        skeleton = self.scale * (G[:, :, :3, 3] - center_j) + center_j + trans_j

        # additional keypoints from final posed vertices (lane-major gather)
        g2 = posed_cv[:, :, self.add_kp_idx]                  # (B, 3, 7, 16)
        add_kp = jnp.swapaxes((g2.max(axis=3) + g2.min(axis=3)) * 0.5, 1, 2)  # (B, 7, 3)
        skeleton = jnp.concatenate([skeleton, add_kp], axis=1)    # (B, 31, 3)

        # skeleton offset path (tiny, glue)
        skel_off = Jt + self.offset                           # (24, 3)
        skel_off_h = jnp.concatenate(
            [skel_off, jnp.ones((NUM_JOINTS, 1), jnp.float32)], axis=1)   # (24, 4)
        skel_off_tr = jnp.einsum('bjrc,jc->bjr', G1, skel_off_h)[:, :, :3]
        skel_off_scaled = self.scale * (skel_off_tr - center_j) + center_j + trans_j

        # Layout conversion only for the consumer-facing (B, V, 3) output.
        posed_vertices = jnp.swapaxes(posed_cv, 1, 2)         # (B, V, 3)
        return posed_vertices, skeleton, skel_off_scaled

    # ------------------------------------------------------------------
    def forward(self, beta, pose, trans):
        posed_vertices, skeleton, skel_off_scaled = self._forward(beta, pose, trans)
        eyes_list = None  # TODO(synk): openmesh-based eye reconstruction not translatable
        return posed_vertices, skeleton, skel_off_scaled, eyes_list


if __name__ == "__main__":
    key = jax.random.PRNGKey(0)
    kb, kp, kt = jax.random.split(key, 3)
    beta = jax.random.normal(kb, (NUM_BETA,), jnp.float32) * 0.5
    pose = jax.random.normal(kp, (B, 72), jnp.float32) * 0.1
    trans = jax.random.normal(kt, (B, 3), jnp.float32) * 0.1

    model = RabitModelEye()
    posed_vertices, skeleton, skel_off_scaled, eyes_list = model.forward(beta, pose, trans)
    jax.block_until_ready((posed_vertices, skeleton, skel_off_scaled))

    assert posed_vertices.shape == (B, V, 3)
    assert skeleton.shape == (B, NUM_JOINTS + 7, 3)
    assert skel_off_scaled.shape == (B, NUM_JOINTS, 3)
    assert jnp.all(jnp.isfinite(posed_vertices))
    assert jnp.all(jnp.isfinite(skeleton))
    assert jnp.all(jnp.isfinite(skel_off_scaled))
    print("KERNEL_OK")
</pallas_src>

<mosaic_0001>
module attributes {stable_mosaic.version = 11 : i64} {
  func.func @_blend_kernel(%arg0: i32, %arg1: memref<1x104xf32, #tpu.memory_space<vmem>>, %arg2: memref<104x3072xf32, #tpu.memory_space<vmem>>, %arg3: memref<1x3072xf32, #tpu.memory_space<vmem>>, %arg4: memref<1x3072xf32, #tpu.memory_space<vmem>>) attributes {dimension_semantics = [#tpu.dimension_semantics<parallel>], iteration_bounds = array<i64: 1>, scalar_prefetch = 0 : i64, scratch_operands = 0 : i64, tpu.core_type = #tpu.core_type<tc>, window_params = [{pipeline_mode = #tpu.pipeline_mode<synchronous>, transform_indices = @transform_0, window_bounds = array<i64: 1, 104>}, {transform_indices = @transform_1, window_bounds = array<i64: 104, 3072>}, {transform_indices = @transform_2, window_bounds = array<i64: 1, 3072>}, {transform_indices = @transform_3, window_bounds = array<i64: 1, 3072>}]} {
    %c0 = arith.constant 0 : index
    %c0_0 = arith.constant 0 : index
    %0 = vector.load %arg1[%c0, %c0_0] : memref<1x104xf32, #tpu.memory_space<vmem>>, vector<1x104xf32>
    %c0_1 = arith.constant 0 : index
    %c0_2 = arith.constant 0 : index
    %1 = vector.load %arg2[%c0_1, %c0_2] : memref<104x3072xf32, #tpu.memory_space<vmem>>, vector<104x3072xf32>
    %cst = arith.constant dense<0.000000e+00> : vector<1x3072xf32>
    %2 = tpu.matmul %0, %1, %cst {dimension_numbers = #tpu.dot_dimension_numbers<[1], [0], [0], [1], [0, 0, 1, 1], [], []>} : vector<1x104xf32>, vector<104x3072xf32>, vector<1x3072xf32> -> vector<1x3072xf32>
    %c0_3 = arith.constant 0 : index
    %c0_4 = arith.constant 0 : index
    %3 = vector.load %arg3[%c0_3, %c0_4] : memref<1x3072xf32, #tpu.memory_space<vmem>>, vector<1x3072xf32>
    %4 = arith.addf %2, %3 : vector<1x3072xf32>
    %c0_5 = arith.constant 0 : index
    %c0_6 = arith.constant 0 : index
    %5 = vector.load %arg4[%c0_5, %c0_6] : memref<1x3072xf32, #tpu.memory_space<vmem>>, vector<1x3072xf32>
    tpu.vector_store %arg4[%c0_5, %c0_6], %4 {strides = array<i32>} : memref<1x3072xf32, #tpu.memory_space<vmem>>, vector<1x3072xf32>,
    return
  }
  func.func @transform_0(%arg0: i32) -> (i32, i32) {
    %c0_i32 = arith.constant 0 : i32
    %c0_i32_0 = arith.constant 0 : i32
    %c0_i32_1 = arith.constant 0 : i32
    return %c0_i32, %c0_i32_0 : i32, i32
  }
  func.func @transform_1(%arg0: i32) -> (i32, i32) {
    %c0_i32 = arith.constant 0 : i32
    %c0_i32_0 = arith.constant 0 : i32
    return %c0_i32, %arg0 : i32, i32
  }
  func.func @transform_2(%arg0: i32) -> (i32, i32) {
    %c0_i32 = arith.constant 0 : i32
    %c0_i32_0 = arith.constant 0 : i32
    return %c0_i32, %arg0 : i32, i32
  }
  func.func @transform_3(%arg0: i32) -> (i32, i32) {
    %c0_i32 = arith.constant 0 : i32
    %c0_i32_0 = arith.constant 0 : i32
    return %c0_i32, %arg0 : i32, i32
  }
}

module attributes {stable_mosaic.version = 11 : i64} {
  func.func @_skin_kernel(%arg0: i32, %arg1: memref<6x96xf32, #tpu.memory_space<vmem>>, %arg2: memref<24x1024xf32, #tpu.memory_space<vmem>>, %arg3: memref<3x1024xf32, #tpu.memory_space<vmem>>, %arg4: memref<6x1024xf32, #tpu.memory_space<vmem>>) attributes {dimension_semantics = [#tpu.dimension_semantics<parallel>], iteration_bounds = array<i64: 1>, scalar_prefetch = 0 : i64, scratch_operands = 0 : i64, tpu.core_type = #tpu.core_type<tc>, window_params = [{pipeline_mode = #tpu.pipeline_mode<synchronous>, transform_indices = @transform_0, window_bounds = array<i64: 6, 96>}, {transform_indices = @transform_1, window_bounds = array<i64: 24, 1024>}, {transform_indices = @transform_2, window_bounds = array<i64: 3, 1024>}, {transform_indices = @transform_3, window_bounds = array<i64: 6, 1024>}]} {
    %c0 = arith.constant 0 : index
    %c0_0 = arith.constant 0 : index
    %0 = vector.load %arg2[%c0, %c0_0] : memref<24x1024xf32, #tpu.memory_space<vmem>>, vector<24x1024xf32>
    %c0_1 = arith.constant 0 : index
    %c0_2 = arith.constant 0 : index
    %1 = vector.load %arg3[%c0_1, %c0_2] : memref<3x1024xf32, #tpu.memory_space<vmem>>, vector<1x1024xf32>
    %2 = vector.broadcast %1 : vector<1x1024xf32> to vector<24x1024xf32>
    %3 = arith.mulf %0, %2 : vector<24x1024xf32>
    %c1 = arith.constant 1 : index
    %c0_3 = arith.constant 0 : index
    %4 = vector.load %arg3[%c1, %c0_3] : memref<3x1024xf32, #tpu.memory_space<vmem>>, vector<1x1024xf32>
    %5 = vector.broadcast %4 : vector<1x1024xf32> to vector<24x1024xf32>
    %6 = arith.mulf %0, %5 : vector<24x1024xf32>
    %c2 = arith.constant 2 : index
    %c0_4 = arith.constant 0 : index
    %7 = vector.load %arg3[%c2, %c0_4] : memref<3x1024xf32, #tpu.memory_space<vmem>>, vector<1x1024xf32>
    %8 = vector.broadcast %7 : vector<1x1024xf32> to vector<24x1024xf32>
    %9 = arith.mulf %0, %8 : vector<24x1024xf32>
    %10 = tpu.concatenate %3, %6, %9, %0 in 0 : vector<24x1024xf32>, vector<24x1024xf32>, vector<24x1024xf32>, vector<24x1024xf32> -> vector<96x1024xf32>
    %c0_5 = arith.constant 0 : index
    %c0_6 = arith.constant 0 : index
    %11 = vector.load %arg1[%c0_5, %c0_6] : memref<6x96xf32, #tpu.memory_space<vmem>>, vector<6x96xf32>
    %cst = arith.constant dense<0.000000e+00> : vector<6x1024xf32>
    %12 = tpu.matmul %11, %10, %cst {dimension_numbers = #tpu.dot_dimension_numbers<[1], [0], [0], [1], [0, 0, 1, 1], [], []>} : vector<6x96xf32>, vector<96x1024xf32>, vector<6x1024xf32> -> vector<6x1024xf32>
    %c0_7 = arith.constant 0 : index
    %c0_8 = arith.constant 0 : index
    %13 = vector.load %arg4[%c0_7, %c0_8] : memref<6x1024xf32, #tpu.memory_space<vmem>>, vector<6x1024xf32>
    tpu.vector_store %arg4[%c0_7, %c0_8], %12 {strides = array<i32>} : memref<6x1024xf32, #tpu.memory_space<vmem>>, vector<6x1024xf32>,
    return
  }
  func.func @transform_0(%arg0: i32) -> (i32, i32) {
    %c0_i32 = arith.constant 0 : i32
    %c0_i32_0 = arith.constant 0 : i32
    %c0_i32_1 = arith.constant 0 : i32
    return %c0_i32, %c0_i32_0 : i32, i32
  }
  func.func @transform_1(%arg0: i32) -> (i32, i32) {
    %c0_i32 = arith.constant 0 : i32
    %c0_i32_0 = arith.constant 0 : i32
    return %c0_i32, %arg0 : i32, i32
  }
  func.func @transform_2(%arg0: i32) -> (i32, i32) {
    %c0_i32 = arith.constant 0 : i32
    %c0_i32_0 = arith.constant 0 : i32
    return %c0_i32, %arg0 : i32, i32
  }
  func.func @transform_3(%arg0: i32) -> (i32, i32) {
    %c0_i32 = arith.constant 0 : i32
    %c0_i32_0 = arith.constant 0 : i32
    return %c0_i32, %arg0 : i32, i32
  }
}

</mosaic_0001>

<llo_original>
// kernel: _forward_impl.2
$region0: #{_forward_impl.2}
  #allocation0 [shape = 'u32[]', space=smem, size = 0x4, offset = 0x4, fixed_abs, tag = 'smem constant byte address 0x4 - core index']
  #allocation1 [shape = 'u32[144,128]{1,0:T(1,128)}', space=vmem, size = 0x12000, scoped, tag = 'internal scratch']
  %s0 = inlined_call_operand.vmem [shape: f32[1,104], index: 0, kind: input, shape index: {}]
  %s1 = inlined_call_operand.hbm [shape: f32[104,3072], index: 1, kind: input, shape index: {}]
  %s2 = inlined_call_operand.hbm [shape: f32[1,3072], index: 2, kind: input, shape index: {}]
  %s3 = inlined_call_operand.vmem [shape: f32[1,3072], index: 3, kind: output, shape index: {}]
  %s4 = sld [smem:[#allocation0]]
  $region30: #{_forward_impl.2} parent=0
    _
  %s6 = ssub.s32 1, %s4
  %s7 = scalar_select 0, %s6, %s4
  $region1: #{_forward_impl.2} parent=0
    #allocation2 [shape = 'u8[1277952]{0}', space=vmem, size = 0x138000, scoped, tag = 'input window, operand 1, single buffered']
    #allocation3 [shape = 's32[1]{0}', space=sflag, size = 0x4, scoped, tag = 'scoped memory for _forward_impl.2']
    #allocation4 [shape = 'u8[12288]{0}', space=vmem, size = 0x3000, scoped, tag = 'input window, operand 2, single buffered']
    #allocation5 [shape = 's32[1]{0}', space=sflag, size = 0x4, scoped, tag = 'scoped memory for _forward_impl.2']
    %8 = vsyncpa [#allocation3], 0
    %9 = vsyncpa [#allocation5], 0
    // Predicated region
    $region2: #{_forward_impl.2} parent=1 // pred_check
      _
    $region3: #{_forward_impl.2} parent=1 // pred_check_branch
      %11 = sbr.rel (0) target = $region5
    $region4: #{_forward_impl.2} parent=1 // pred_region
      _
    $region5: #{_forward_impl.2} parent=1 // pred_fallthru
      _
    // Predicated region
    $region6: #{_forward_impl.2} parent=1 // pred_check
      _
    $region7: #{_forward_impl.2} parent=1 // pred_check_branch
      %13 = sbr.rel (0) target = $region9
    $region8: #{_forward_impl.2} parent=1 // pred_region
      %s15 = ssub.s32 39936, 39936
      %16 = vsyncadd [#allocation3], %s15
      %s17 = sshll.u32 [#allocation2], 4
      %s18 = int_to_ptr.vmem [resolvable:$true] %s17
      %23 = dma.hbm_to_vmem [thread:$0]  %s1, 39936, %s18, [#allocation3], 3072, 3072, 192
    $region9: #{_forward_impl.2} parent=1 // pred_fallthru
      _
    // Predicated region
    $region10: #{_forward_impl.2} parent=1 // pred_check
      _
    $region11: #{_forward_impl.2} parent=1 // pred_check_branch
      %25 = sbr.rel (0) target = $region13
    $region12: #{_forward_impl.2} parent=1 // pred_region
      %s27 = ssub.s32 384, 384
      %28 = vsyncadd [#allocation5], %s27
      %s30 = sshll.u32 [#allocation4], 4
      %s31 = int_to_ptr.vmem [resolvable:$true] %s30
      %33 = dma.hbm_to_vmem [thread:$0]  %s2, 384, %s31, [#allocation5]
    $region13: #{_forward_impl.2} parent=1 // pred_fallthru
      _
    // Predicated region
    $region14: #{_forward_impl.2} parent=1 // pred_check
      _
    $region15: #{_forward_impl.2} parent=1 // pred_check_branch
      %35 = sbr.rel (0) target = $region17
    $region16: #{_forward_impl.2} parent=1 // pred_region
      %36 = dma.done [#allocation3], 39936
    $region17: #{_forward_impl.2} parent=1 // pred_fallthru
      _
    // Predicated region
    $region18: #{_forward_impl.2} parent=1 // pred_check
      _
    $region19: #{_forward_impl.2} parent=1 // pred_check_branch
      %38 = sbr.rel (0) target = $region21
    $region20: #{_forward_impl.2} parent=1 // pred_region
      %39 = dma.done [#allocation5], 384
    $region21: #{_forward_impl.2} parent=1 // pred_fallthru
      _
    %v40 = vld [vmem:[%s0] sm:$0x1]
    %v41 = vld [vmem:[#allocation2] sm:$0xff]
    %v42 = vld [vmem:[#allocation2 + $0x8] sm:$0xff]
    %v43 = vld [vmem:[#allocation2 + $0x10] sm:$0xff]
    %v44 = vld [vmem:[#allocation2 + $0x18] sm:$0xff]
    %v45 = vld [vmem:[#allocation2 + $0x20] sm:$0xff]
    %v46 = vld [vmem:[#allocation2 + $0x28] sm:$0xff]
    %v47 = vld [vmem:[#allocation2 + $0x30] sm:$0xff]
    %v48 = vld [vmem:[#allocation2 + $0x38] sm:$0xff]
    %v49 = vld [vmem:[#allocation2 + $0x40] sm:$0xff]
    %v50 = vld [vmem:[#allocation2 + $0x48] sm:$0xff]
    %v51 = vld [vmem:[#allocation2 + $0x50] sm:$0xff]
    %v52 = vld [vmem:[#allocation2 + $0x58] sm:$0xff]
    %v53 = vld [vmem:[#allocation2 + $0x60] sm:$0xff]
    %v54 = vld [vmem:[#allocation2 + $0x68] sm:$0xff]
    %v55 = vld [vmem:[#allocation2 + $0x70] sm:$0xff]
    %v56 = vld [vmem:[#allocation2 + $0x78] sm:$0xff]
    %v57 = vld [vmem:[#allocation2 + $0x80] sm:$0xff]
    %v58 = vld [vmem:[#allocation2 + $0x88] sm:$0xff]
    %v59 = vld [vmem:[#allocation2 + $0x90] sm:$0xff]
    %v60 = vld [vmem:[#allocation2 + $0x98] sm:$0xff]
    %v61 = vld [vmem:[#allocation2 + $0xa0] sm:$0xff]
    %v62 = vld [vmem:[#allocation2 + $0xa8] sm:$0xff]
    %v63 = vld [vmem:[#allocation2 + $0xb0] sm:$0xff]
    %v64 = vld [vmem:[#allocation2 + $0xb8] sm:$0xff]
    %v65 = vld [vmem:[#allocation2 + $0xc0] sm:$0xff]
    %v66 = vld [vmem:[#allocation2 + $0xc8] sm:$0xff]
    %v67 = vld [vmem:[#allocation2 + $0xd0] sm:$0xff]
    %v68 = vld [vmem:[#allocation2 + $0xd8] sm:$0xff]
    %v69 = vld [vmem:[#allocation2 + $0xe0] sm:$0xff]
    %v70 = vld [vmem:[#allocation2 + $0xe8] sm:$0xff]
    %v71 = vld [vmem:[#allocation2 + $0xf0] sm:$0xff]
    %v72 = vld [vmem:[#allocation2 + $0xf8] sm:$0xff]
    %v73 = vld [vmem:[#allocation2 + $0x100] sm:$0xff]
    %v74 = vld [vmem:[#allocation2 + $0x108] sm:$0xff]
    %v75 = vld [vmem:[#allocation2 + $0x110] sm:$0xff]
    %v76 = vld [vmem:[#allocation2 + $0x118] sm:$0xff]
    %v77 = vld [vmem:[#allocation2 + $0x120] sm:$0xff]
    %v78 = vld [vmem:[#allocation2 + $0x128] sm:$0xff]
    %v79 = vld [vmem:[#allocation2 + $0x130] sm:$0xff]
    %v80 = vld [vmem:[#allocation2 + $0x138] sm:$0xff]
    %v81 = vld [vmem:[#allocation2 + $0x140] sm:$0xff]
    %v82 = vld [vmem:[#allocation2 + $0x148] sm:$0xff]
    %v83 = vld [vmem:[#allocation2 + $0x150] sm:$0xff]
    %v84 = vld [vmem:[#allocation2 + $0x158] sm:$0xff]
    %v85 = vld [vmem:[#allocation2 + $0x160] sm:$0xff]
    %v86 = vld [vmem:[#allocation2 + $0x168] sm:$0xff]
    %v87 = vld [vmem:[#allocation2 + $0x170] sm:$0xff]
    %v88 = vld [vmem:[#allocation2 + $0x178] sm:$0xff]
    %v89 = vld [vmem:[#allocation2 + $0x180] sm:$0xff]
    %v90 = vld [vmem:[#allocation2 + $0x188] sm:$0xff]
    %v91 = vld [vmem:[#allocation2 + $0x190] sm:$0xff]
    %v92 = vld [vmem:[#allocation2 + $0x198] sm:$0xff]
    %v93 = vld [vmem:[#allocation2 + $0x1a0] sm:$0xff]
    %v94 = vld [vmem:[#allocation2 + $0x1a8] sm:$0xff]
    %v95 = vld [vmem:[#allocation2 + $0x1b0] sm:$0xff]
    %v96 = vld [vmem:[#allocation2 + $0x1b8] sm:$0xff]
    %v97 = vld [vmem:[#allocation2 + $0x1c0] sm:$0xff]
    %v98 = vld [vmem:[#allocation2 + $0x1c8] sm:$0xff]
    %v99 = vld [vmem:[#allocation2 + $0x1d0] sm:$0xff]
    %v100 = vld [vmem:[#allocation2 + $0x1d8] sm:$0xff]
    %v101 = vld [vmem:[#allocation2 + $0x1e0] sm:$0xff]
    %v102 = vld [vmem:[#allocation2 + $0x1e8] sm:$0xff]
    %v103 = vld [vmem:[#allocation2 + $0x1f0] sm:$0xff]
    %v104 = vld [vmem:[#allocation2 + $0x1f8] sm:$0xff]
    %v105 = vld [vmem:[#allocation2 + $0x200] sm:$0xff]
    %v106 = vld [vmem:[#allocation2 + $0x208] sm:$0xff]
    %v107 = vld [vmem:[#allocation2 + $0x210] sm:$0xff]
    %v108 = vld [vmem:[#allocation2 + $0x218] sm:$0xff]
    %v109 = vld [vmem:[#allocation2 + $0x220] sm:$0xff]
    %v110 = vld [vmem:[#allocation2 + $0x228] sm:$0xff]
    %v111 = vld [vmem:[#allocation2 + $0x230] sm:$0xff]
    %v112 = vld [vmem:[#allocation2 + $0x238] sm:$0xff]
    %v113 = vld [vmem:[#allocation2 + $0x240] sm:$0xff]
    %v114 = vld [vmem:[#allocation2 + $0x248] sm:$0xff]
    %v115 = vld [vmem:[#allocation2 + $0x250] sm:$0xff]
    %v116 = vld [vmem:[#allocation2 + $0x258] sm:$0xff]
    %v117 = vld [vmem:[#allocation2 + $0x260] sm:$0xff]
    %v118 = vld [vmem:[#allocation2 + $0x268] sm:$0xff]
    %v119 = vld [vmem:[#allocation2 + $0x270] sm:$0xff]
    %v120 = vld [vmem:[#allocation2 + $0x278] sm:$0xff]
    %v121 = vld [vmem:[#allocation2 + $0x280] sm:$0xff]
    %v122 = vld [vmem:[#allocation2 + $0x288] sm:$0xff]
    %v123 = vld [vmem:[#allocation2 + $0x290] sm:$0xff]
    %v124 = vld [vmem:[#allocation2 + $0x298] sm:$0xff]
    %v125 = vld [vmem:[#allocation2 + $0x2a0] sm:$0xff]
    %v126 = vld [vmem:[#allocation2 + $0x2a8] sm:$0xff]
    %v127 = vld [vmem:[#allocation2 + $0x2b0] sm:$0xff]
    %v128 = vld [vmem:[#allocation2 + $0x2b8] sm:$0xff]
    %v129 = vld [vmem:[#allocation2 + $0x2c0] sm:$0xff]
    %v130 = vld [vmem:[#allocation2 + $0x2c8] sm:$0xff]
    %v131 = vld [vmem:[#allocation2 + $0x2d0] sm:$0xff]
    %v132 = vld [vmem:[#allocation2 + $0x2d8] sm:$0xff]
    %v133 = vld [vmem:[#allocation2 + $0x2e0] sm:$0xff]
    %v134 = vld [vmem:[#allocation2 + $0x2e8] sm:$0xff]
    %v135 = vld [vmem:[#allocation2 + $0x2f0] sm:$0xff]
    %v136 = vld [vmem:[#allocation2 + $0x2f8] sm:$0xff]
    %v137 = vld [vmem:[#allocation2 + $0x300] sm:$0xff]
    %v138 = vld [vmem:[#allocation2 + $0x308] sm:$0xff]
    %v139 = vld [vmem:[#allocation2 + $0x310] sm:$0xff]
    %v140 = vld [vmem:[#allocation2 + $0x318] sm:$0xff]
    %v141 = vld [vmem:[#allocation2 + $0x320] sm:$0xff]
    %v142 = vld [vmem:[#allocation2 + $0x328] sm:$0xff]
    %v143 = vld [vmem:[#allocation2 + $0x330] sm:$0xff]
    %v144 = vld [vmem:[#allocation2 + $0x338] sm:$0xff]
    %v145 = vld [vmem:[#allocation2 + $0x340] sm:$0xff]
    %v146 = vld [vmem:[#allocation2 + $0x348] sm:$0xff]
    %v147 = vld [vmem:[#allocation2 + $0x350] sm:$0xff]
    %v148 = vld [vmem:[#allocation2 + $0x358] sm:$0xff]
    %v149 = vld [vmem:[#allocation2 + $0x360] sm:$0xff]
    %v150 = vld [vmem:[#allocation2 + $0x368] sm:$0xff]
    %v151 = vld [vmem:[#allocation2 + $0x370] sm:$0xff]
    %v152 = vld [vmem:[#allocation2 + $0x378] sm:$0xff]
    %v153 = vld [vmem:[#allocation2 + $0x380] sm:$0xff]
    %v154 = vld [vmem:[#allocation2 + $0x388] sm:$0xff]
    %v155 = vld [vmem:[#allocation2 + $0x390] sm:$0xff]
    %v156 = vld [vmem:[#allocation2 + $0x398] sm:$0xff]
    %v157 = vld [vmem:[#allocation2 + $0x3a0] sm:$0xff]
    %v158 = vld [vmem:[#allocation2 + $0x3a8] sm:$0xff]
    %v159 = vld [vmem:[#allocation2 + $0x3b0] sm:$0xff]
    %v160 = vld [vmem:[#allocation2 + $0x3b8] sm:$0xff]
    %v161 = vld [vmem:[#allocation2 + $0x3c0] sm:$0xff]
    %v162 = vld [vmem:[#allocation2 + $0x3c8] sm:$0xff]
    %v163 = vld [vmem:[#allocation2 + $0x3d0] sm:$0xff]
    %v164 = vld [vmem:[#allocation2 + $0x3d8] sm:$0xff]
    %v165 = vld [vmem:[#allocation2 + $0x3e0] sm:$0xff]
    %v166 = vld [vmem:[#allocation2 + $0x3e8] sm:$0xff]
    %v167 = vld [vmem:[#allocation2 + $0x3f0] sm:$0xff]
    %v168 = vld [vmem:[#allocation2 + $0x3f8] sm:$0xff]
    %v169 = vld [vmem:[#allocation2 + $0x400] sm:$0xff]
    %v170 = vld [vmem:[#allocation2 + $0x408] sm:$0xff]
    %v171 = vld [vmem:[#allocation2 + $0x410] sm:$0xff]
    %v172 = vld [vmem:[#allocation2 + $0x418] sm:$0xff]
    %v173 = vld [vmem:[#allocation2 + $0x420] sm:$0xff]
    %v174 = vld [vmem:[#allocation2 + $0x428] sm:$0xff]
    %v175 = vld [vmem:[#allocation2 + $0x430] sm:$0xff]
    %v176 = vld [vmem:[#allocation2 + $0x438] sm:$0xff]
    %v177 = vld [vmem:[#allocation2 + $0x440] sm:$0xff]
    %v178 = vld [vmem:[#allocation2 + $0x448] sm:$0xff]
    %v179 = vld [vmem:[#allocation2 + $0x450] sm:$0xff]
    %v180 = vld [vmem:[#allocation2 + $0x458] sm:$0xff]
    %v181 = vld [vmem:[#allocation2 + $0x460] sm:$0xff]
    %v182 = vld [vmem:[#allocation2 + $0x468] sm:$0xff]
    %v183 = vld [vmem:[#allocation2 + $0x470] sm:$0xff]
    %v184 = vld [vmem:[#allocation2 + $0x478] sm:$0xff]
    %v185 = vld [vmem:[#allocation2 + $0x480] sm:$0xff]
    %v186 = vld [vmem:[#allocation2 + $0x488] sm:$0xff]
    %v187 = vld [vmem:[#allocation2 + $0x490] sm:$0xff]
    %v188 = vld [vmem:[#allocation2 + $0x498] sm:$0xff]
    %v189 = vld [vmem:[#allocation2 + $0x4a0] sm:$0xff]
    %v190 = vld [vmem:[#allocation2 + $0x4a8] sm:$0xff]
    %v191 = vld [vmem:[#allocation2 + $0x4b0] sm:$0xff]
    %v192 = vld [vmem:[#allocation2 + $0x4b8] sm:$0xff]
    %v193 = vld [vmem:[#allocation2 + $0x4c0] sm:$0xff]
    %v194 = vld [vmem:[#allocation2 + $0x4c8] sm:$0xff]
    %v195 = vld [vmem:[#allocation2 + $0x4d0] sm:$0xff]
    %v196 = vld [vmem:[#allocation2 + $0x4d8] sm:$0xff]
    %v197 = vld [vmem:[#allocation2 + $0x4e0] sm:$0xff]
    %v198 = vld [vmem:[#allocation2 + $0x4e8] sm:$0xff]
    %v199 = vld [vmem:[#allocation2 + $0x4f0] sm:$0xff]
    %v200 = vld [vmem:[#allocation2 + $0x4f8] sm:$0xff]
    %v201 = vld [vmem:[#allocation2 + $0x500] sm:$0xff]
    %v202 = vld [vmem:[#allocation2 + $0x508] sm:$0xff]
    %v203 = vld [vmem:[#allocation2 + $0x510] sm:$0xff]
    %v204 = vld [vmem:[#allocation2 + $0x518] sm:$0xff]
    %v205 = vld [vmem:[#allocation2 + $0x520] sm:$0xff]
    %v206 = vld [vmem:[#allocation2 + $0x528] sm:$0xff]
    %v207 = vld [vmem:[#allocation2 + $0x530] sm:$0xff]
    %v208 = vld [vmem:[#allocation2 + $0x538] sm:$0xff]
    %v209 = vld [vmem:[#allocation2 + $0x540] sm:$0xff]
    %v210 = vld [vmem:[#allocation2 + $0x548] sm:$0xff]
    %v211 = vld [vmem:[#allocation2 + $0x550] sm:$0xff]
    %v212 = vld [vmem:[#allocation2 + $0x558] sm:$0xff]
    %v213 = vld [vmem:[#allocation2 + $0x560] sm:$0xff]
    %v214 = vld [vmem:[#allocation2 + $0x568] sm:$0xff]
    %v215 = vld [vmem:[#allocation2 + $0x570] sm:$0xff]
    %v216 = vld [vmem:[#allocation2 + $0x578] sm:$0xff]
    %v217 = vld [vmem:[#allocation2 + $0x580] sm:$0xff]
    %v218 = vld [vmem:[#allocation2 + $0x588] sm:$0xff]
    %v219 = vld [vmem:[#allocation2 + $0x590] sm:$0xff]
    %v220 = vld [vmem:[#allocation2 + $0x598] sm:$0xff]
    %v221 = vld [vmem:[#allocation2 + $0x5a0] sm:$0xff]
    %v222 = vld [vmem:[#allocation2 + $0x5a8] sm:$0xff]
    %v223 = vld [vmem:[#allocation2 + $0x5b0] sm:$0xff]
    %v224 = vld [vmem:[#allocation2 + $0x5b8] sm:$0xff]
    %v225 = vld [vmem:[#allocation2 + $0x5c0] sm:$0xff]
    %v226 = vld [vmem:[#allocation2 + $0x5c8] sm:$0xff]
    %v227 = vld [vmem:[#allocation2 + $0x5d0] sm:$0xff]
    %v228 = vld [vmem:[#allocation2 + $0x5d8] sm:$0xff]
    %v229 = vld [vmem:[#allocation2 + $0x5e0] sm:$0xff]
    %v230 = vld [vmem:[#allocation2 + $0x5e8] sm:$0xff]
    %v231 = vld [vmem:[#allocation2 + $0x5f0] sm:$0xff]
    %v232 = vld [vmem:[#allocation2 + $0x5f8] sm:$0xff]
    %v233 = vld [vmem:[#allocation2 + $0x600] sm:$0xff]
    %v234 = vld [vmem:[#allocation2 + $0x608] sm:$0xff]
    %v235 = vld [vmem:[#allocation2 + $0x610] sm:$0xff]
    %v236 = vld [vmem:[#allocation2 + $0x618] sm:$0xff]
    %v237 = vld [vmem:[#allocation2 + $0x620] sm:$0xff]
    %v238 = vld [vmem:[#allocation2 + $0x628] sm:$0xff]
    %v239 = vld [vmem:[#allocation2 + $0x630] sm:$0xff]
    %v240 = vld [vmem:[#allocation2 + $0x638] sm:$0xff]
    %v241 = vld [vmem:[#allocation2 + $0x640] sm:$0xff]
    %v242 = vld [vmem:[#allocation2 + $0x648] sm:$0xff]
    %v243 = vld [vmem:[#allocation2 + $0x650] sm:$0xff]
    %v244 = vld [vmem:[#allocation2 + $0x658] sm:$0xff]
    %v245 = vld [vmem:[#allocation2 + $0x660] sm:$0xff]
    %v246 = vld [vmem:[#allocation2 + $0x668] sm:$0xff]
    %v247 = vld [vmem:[#allocation2 + $0x670] sm:$0xff]
    %v248 = vld [vmem:[#allocation2 + $0x678] sm:$0xff]
    %v249 = vld [vmem:[#allocation2 + $0x680] sm:$0xff]
    %v250 = vld [vmem:[#allocation2 + $0x688] sm:$0xff]
    %v251 = vld [vmem:[#allocation2 + $0x690] sm:$0xff]
    %v252 = vld [vmem:[#allocation2 + $0x698] sm:$0xff]
    %v253 = vld [vmem:[#allocation2 + $0x6a0] sm:$0xff]
    %v254 = vld [vmem:[#allocation2 + $0x6a8] sm:$0xff]
    %v255 = vld [vmem:[#allocation2 + $0x6b0] sm:$0xff]
    %v256 = vld [vmem:[#allocation2 + $0x6b8] sm:$0xff]
    %v257 = vld [vmem:[#allocation2 + $0x6c0] sm:$0xff]
    %v258 = vld [vmem:[#allocation2 + $0x6c8] sm:$0xff]
    %v259 = vld [vmem:[#allocation2 + $0x6d0] sm:$0xff]
    %v260 = vld [vmem:[#allocation2 + $0x6d8] sm:$0xff]
    %v261 = vld [vmem:[#allocation2 + $0x6e0] sm:$0xff]
    %v262 = vld [vmem:[#allocation2 + $0x6e8] sm:$0xff]
    %v263 = vld [vmem:[#allocation2 + $0x6f0] sm:$0xff]
    %v264 = vld [vmem:[#allocation2 + $0x6f8] sm:$0xff]
    %v265 = vld [vmem:[#allocation2 + $0x700] sm:$0xff]
    %v266 = vld [vmem:[#allocation2 + $0x708] sm:$0xff]
    %v267 = vld [vmem:[#allocation2 + $0x710] sm:$0xff]
    %v268 = vld [vmem:[#allocation2 + $0x718] sm:$0xff]
    %v269 = vld [vmem:[#allocation2 + $0x720] sm:$0xff]
    %v270 = vld [vmem:[#allocation2 + $0x728] sm:$0xff]
    %v271 = vld [vmem:[#allocation2 + $0x730] sm:$0xff]
    %v272 = vld [vmem:[#allocation2 + $0x738] sm:$0xff]
    %v273 = vld [vmem:[#allocation2 + $0x740] sm:$0xff]
    %v274 = vld [vmem:[#allocation2 + $0x748] sm:$0xff]
    %v275 = vld [vmem:[#allocation2 + $0x750] sm:$0xff]
    %v276 = vld [vmem:[#allocation2 + $0x758] sm:$0xff]
    %v277 = vld [vmem:[#allocation2 + $0x760] sm:$0xff]
    %v278 = vld [vmem:[#allocation2 + $0x768] sm:$0xff]
    %v279 = vld [vmem:[#allocation2 + $0x770] sm:$0xff]
    %v280 = vld [vmem:[#allocation2 + $0x778] sm:$0xff]
    %v281 = vld [vmem:[#allocation2 + $0x780] sm:$0xff]
    %v282 = vld [vmem:[#allocation2 + $0x788] sm:$0xff]
    %v283 = vld [vmem:[#allocation2 + $0x790] sm:$0xff]
    %v284 = vld [vmem:[#allocation2 + $0x798] sm:$0xff]
    %v285 = vld [vmem:[#allocation2 + $0x7a0] sm:$0xff]
    %v286 = vld [vmem:[#allocation2 + $0x7a8] sm:$0xff]
    %v287 = vld [vmem:[#allocation2 + $0x7b0] sm:$0xff]
    %v288 = vld [vmem:[#allocation2 + $0x7b8] sm:$0xff]
    %v289 = vld [vmem:[#allocation2 + $0x7c0] sm:$0xff]
    %v290 = vld [vmem:[#allocation2 + $0x7c8] sm:$0xff]
    %v291 = vld [vmem:[#allocation2 + $0x7d0] sm:$0xff]
    %v292 = vld [vmem:[#allocation2 + $0x7d8] sm:$0xff]
    %v293 = vld [vmem:[#allocation2 + $0x7e0] sm:$0xff]
    %v294 = vld [vmem:[#allocation2 + $0x7e8] sm:$0xff]
    %v295 = vld [vmem:[#allocation2 + $0x7f0] sm:$0xff]
    %v296 = vld [vmem:[#allocation2 + $0x7f8] sm:$0xff]
    %v297 = vld [vmem:[#allocation2 + $0x800] sm:$0xff]
    %v298 = vld [vmem:[#allocation2 + $0x808] sm:$0xff]
    %v299 = vld [vmem:[#allocation2 + $0x810] sm:$0xff]
    %v300 = vld [vmem:[#allocation2 + $0x818] sm:$0xff]
    %v301 = vld [vmem:[#allocation2 + $0x820] sm:$0xff]
    %v302 = vld [vmem:[#allocation2 + $0x828] sm:$0xff]
    %v303 = vld [vmem:[#allocation2 + $0x830] sm:$0xff]
    %v304 = vld [vmem:[#allocation2 + $0x838] sm:$0xff]
    %v305 = vld [vmem:[#allocation2 + $0x840] sm:$0xff]
    %v306 = vld [vmem:[#allocation2 + $0x848] sm:$0xff]
    %v307 = vld [vmem:[#allocation2 + $0x850] sm:$0xff]
    %v308 = vld [vmem:[#allocation2 + $0x858] sm:$0xff]
    %v309 = vld [vmem:[#allocation2 + $0x860] sm:$0xff]
    %v310 = vld [vmem:[#allocation2 + $0x868] sm:$0xff]
    %v311 = vld [vmem:[#allocation2 + $0x870] sm:$0xff]
    %v312 = vld [vmem:[#allocation2 + $0x878] sm:$0xff]
    %v313 = vld [vmem:[#allocation2 + $0x880] sm:$0xff]
    %v314 = vld [vmem:[#allocation2 + $0x888] sm:$0xff]
    %v315 = vld [vmem:[#allocation2 + $0x890] sm:$0xff]
    %v316 = vld [vmem:[#allocation2 + $0x898] sm:$0xff]
    %v317 = vld [vmem:[#allocation2 + $0x8a0] sm:$0xff]
    %v318 = vld [vmem:[#allocation2 + $0x8a8] sm:$0xff]
    %v319 = vld [vmem:[#allocation2 + $0x8b0] sm:$0xff]
    %v320 = vld [vmem:[#allocation2 + $0x8b8] sm:$0xff]
    %v321 = vld [vmem:[#allocation2 + $0x8c0] sm:$0xff]
    %v322 = vld [vmem:[#allocation2 + $0x8c8] sm:$0xff]
    %v323 = vld [vmem:[#allocation2 + $0x8d0] sm:$0xff]
    %v324 = vld [vmem:[#allocation2 + $0x8d8] sm:$0xff]
    %v325 = vld [vmem:[#allocation2 + $0x8e0] sm:$0xff]
    %v326 = vld [vmem:[#allocation2 + $0x8e8] sm:$0xff]
    %v327 = vld [vmem:[#allocation2 + $0x8f0] sm:$0xff]
    %v328 = vld [vmem:[#allocation2 + $0x8f8] sm:$0xff]
    %v329 = vld [vmem:[#allocation2 + $0x900] sm:$0xff]
    %v330 = vld [vmem:[#allocation2 + $0x908] sm:$0xff]
    %v331 = vld [vmem:[#allocation2 + $0x910] sm:$0xff]
    %v332 = vld [vmem:[#allocation2 + $0x918] sm:$0xff]
    %v333 = vld [vmem:[#allocation2 + $0x920] sm:$0xff]
    %v334 = vld [vmem:[#allocation2 + $0x928] sm:$0xff]
    %v335 = vld [vmem:[#allocation2 + $0x930] sm:$0xff]
    %v336 = vld [vmem:[#allocation2 + $0x938] sm:$0xff]
    %v337 = vld [vmem:[#allocation2 + $0x940] sm:$0xff]
    %v338 = vld [vmem:[#allocation2 + $0x948] sm:$0xff]
    %v339 = vld [vmem:[#allocation2 + $0x950] sm:$0xff]
    %v340 = vld [vmem:[#allocation2 + $0x958] sm:$0xff]
    %v341 = vld [vmem:[#allocation2 + $0x960] sm:$0xff]
    %v342 = vld [vmem:[#allocation2 + $0x968] sm:$0xff]
    %v343 = vld [vmem:[#allocation2 + $0x970] sm:$0xff]
    %v344 = vld [vmem:[#allocation2 + $0x978] sm:$0xff]
    %v345 = vld [vmem:[#allocation2 + $0x980] sm:$0xff]
    %v346 = vld [vmem:[#allocation2 + $0x988] sm:$0xff]
    %v347 = vld [vmem:[#allocation2 + $0x990] sm:$0xff]
    %v348 = vld [vmem:[#allocation2 + $0x998] sm:$0xff]
    %v349 = vld [vmem:[#allocation2 + $0x9a0] sm:$0xff]
    %v350 = vld [vmem:[#allocation2 + $0x9a8] sm:$0xff]
    %v351 = vld [vmem:[#allocation2 + $0x9b0] sm:$0xff]
    %v352 = vld [vmem:[#allocation2 + $0x9b8] sm:$0xff]
    %v353 = vld [vmem:[#allocation4] sm:$0xff]
    %v354 = vld [vmem:[#allocation4 + $0x8] sm:$0xff]
    %v355 = vld [vmem:[#allocation4 + $0x10] sm:$0xff]
    %v359 = vlaneseq
    %v360 = vshrl.u32 %v359, 7
    %v361 = vsub.s32 0, %v360
    %v362 = vrot.slane %v353, %v361
    %v363 = vlaneseq
    %v364 = vshrl.u32 %v363, 7
    %v365 = vsub.s32 1, %v364
    %v366 = vrot.slane %v353, %v365
    %v367 = vlaneseq
    %v368 = vshrl.u32 %v367, 7
    %v369 = vsub.s32 2, %v368
    %v370 = vrot.slane %v353, %v369
    %v371 = vlaneseq
    %v372 = vshrl.u32 %v371, 7
    %v373 = vsub.s32 3, %v372
    %v374 = vrot.slane %v353, %v373
    %v375 = vlaneseq
    %v376 = vshrl.u32 %v375, 7
    %v377 = vsub.s32 4, %v376
    %v378 = vrot.slane %v353, %v377
    %v379 = vlaneseq
    %v380 = vshrl.u32 %v379, 7
    %v381 = vsub.s32 5, %v380
    %v382 = vrot.slane %v353, %v381
    %v383 = vlaneseq
    %v384 = vshrl.u32 %v383, 7
    %v385 = vsub.s32 6, %v384
    %v386 = vrot.slane %v353, %v385
    %v387 = vlaneseq
    %v388 = vshrl.u32 %v387, 7
    %v389 = vsub.s32 7, %v388
    %v390 = vrot.slane %v353, %v389
    %v391 = vlaneseq
    %v392 = vshrl.u32 %v391, 7
    %v393 = vsub.s32 0, %v392
    %v394 = vrot.slane %v354, %v393
    %v395 = vlaneseq
    %v396 = vshrl.u32 %v395, 7
    %v397 = vsub.s32 1, %v396
    %v398 = vrot.slane %v354, %v397
    %v399 = vlaneseq
    %v400 = vshrl.u32 %v399, 7
    %v401 = vsub.s32 2, %v400
    %v402 = vrot.slane %v354, %v401
    %v403 = vlaneseq
    %v404 = vshrl.u32 %v403, 7
    %v405 = vsub.s32 3, %v404
    %v406 = vrot.slane %v354, %v405
    %v407 = vlaneseq
    %v408 = vshrl.u32 %v407, 7
    %v409 = vsub.s32 4, %v408
    %v410 = vrot.slane %v354, %v409
    %v411 = vlaneseq
    %v412 = vshrl.u32 %v411, 7
    %v413 = vsub.s32 5, %v412
    %v414 = vrot.slane %v354, %v413
    %v415 = vlaneseq
    %v416 = vshrl.u32 %v415, 7
    %v417 = vsub.s32 6, %v416
    %v418 = vrot.slane %v354, %v417
    %v419 = vlaneseq
    %v420 = vshrl.u32 %v419, 7
    %v421 = vsub.s32 7, %v420
    %v422 = vrot.slane %v354, %v421
    %v423 = vlaneseq
    %v424 = vshrl.u32 %v423, 7
    %v425 = vsub.s32 0, %v424
    %v426 = vrot.slane %v355, %v425
    %v427 = vlaneseq
    %v428 = vshrl.u32 %v427, 7
    %v429 = vsub.s32 1, %v428
    %v430 = vrot.slane %v355, %v429
    %v431 = vlaneseq
    %v432 = vshrl.u32 %v431, 7
    %v433 = vsub.s32 2, %v432
    %v434 = vrot.slane %v355, %v433
    %v435 = vlaneseq
    %v436 = vshrl.u32 %v435, 7
    %v437 = vsub.s32 3, %v436
    %v438 = vrot.slane %v355, %v437
    %v439 = vlaneseq
    %v440 = vshrl.u32 %v439, 7
    %v441 = vsub.s32 4, %v440
    %v442 = vrot.slane %v355, %v441
    %v443 = vlaneseq
    %v444 = vshrl.u32 %v443, 7
    %v445 = vsub.s32 5, %v444
    %v446 = vrot.slane %v355, %v445
    %v447 = vlaneseq
    %v448 = vshrl.u32 %v447, 7
    %v449 = vsub.s32 6, %v448
    %v450 = vrot.slane %v355, %v449
    %v451 = vlaneseq
    %v452 = vshrl.u32 %v451, 7
    %v453 = vsub.s32 7, %v452
    %v454 = vrot.slane %v355, %v453
    %vm479 = vcmask 850944
    %v481 = vsel %vm479, %v40, 0
    %483 = vmatprep.subr.mxu0 0.0
    %484 = vmatpush1.msra.mxu0 0.0
    %485 = vmatprep.subr.mxu0 0.0
    %486 = vmatpush1.msra.mxu0 0.0
    %487 = vmatprep.subr.mxu0 0.0
    %488 = vmatpush1.msra.mxu0 0.0
    %489 = vmatprep.subr.mxu0 %v330
    %490 = vmatpush1.msra.mxu0 %v329
    %491 = vmatprep.subr.mxu0 %v306
    %492 = vmatpush1.msra.mxu0 %v305
    %493 = vmatprep.subr.mxu0 %v282
    %494 = vmatpush1.msra.mxu0 %v281
    %495 = vmatprep.subr.mxu0 %v258
    %496 = vmatpush1.msra.mxu0 %v257
    %497 = vmatprep.subr.mxu0 %v234
    %498 = vmatpush1.msra.mxu0 %v233
    %499 = vmatprep.subr.mxu0 %v210
    %500 = vmatpush1.msra.mxu0 %v209
    %501 = vmatprep.subr.mxu0 %v186
    %502 = vmatpush1.msra.mxu0 %v185
    %503 = vmatprep.subr.mxu0 %v162
    %504 = vmatpush1.msra.mxu0 %v161
    %505 = vmatprep.subr.mxu0 %v138
    %506 = vmatpush1.msra.mxu0 %v137
    %507 = vmatprep.subr.mxu0 %v114
    %508 = vmatpush1.msra.mxu0 %v113
    %509 = vmatprep.subr.mxu0 %v90
    %510 = vmatpush1.msra.mxu0 %v89
    %511 = vmatprep.subr.mxu0 %v66
    %512 = vmatpush1.msra.mxu0 %v65
    %513 = vmatprep.subr.mxu0 %v42
    %514 = vmatpush1.msra.mxu0 %v41
    %515 = vmatprep.subr.mxu0 0.0
    %516 = vmatpush2.msra.mxu0 0.0
    %517 = vmatprep.subr.mxu0 0.0
    %518 = vmatpush2.msra.mxu0 0.0
    %519 = vmatprep.subr.mxu0 0.0
    %520 = vmatpush2.msra.mxu0 0.0
    %521 = vmatprep.subr.mxu0 0.0
    %522 = vmatpush2.msra.mxu0 0.0
    %523 = vmatprep.subr.mxu0 0.0
    %524 = vmatpush2.msra.mxu0 0.0
    %525 = vmatprep.subr.mxu0 0.0
    %526 = vmatpush2.msra.mxu0 0.0
    %527 = vmatprep.subr.mxu0 0.0
    %528 = vmatpush2.msra.mxu0 0.0
    %529 = vmatprep.subr.mxu0 0.0
    %530 = vmatpush2.msra.mxu0 0.0
    %531 = vmatprep.subr.mxu0 0.0
    %532 = vmatpush2.msra.mxu0 0.0
    %533 = vmatprep.subr.mxu0 0.0
    %534 = vmatpush2.msra.mxu0 0.0
    %535 = vmatprep.subr.mxu0 0.0
    %536 = vmatpush2.msra.mxu0 0.0
    %537 = vmatprep.subr.mxu0 0.0
    %538 = vmatpush2.msra.mxu0 0.0
    %539 = vmatprep.subr.mxu0 0.0
    %540 = vmatpush2.msra.mxu0 0.0
    %541 = vmatprep.subr.mxu0 0.0
    %542 = vmatpush2.msra.mxu0 0.0
    %543 = vmatprep.subr.mxu0 0.0
    %544 = vmatpush2.msra.mxu0 0.0
    %545 = vmatprep.subr.mxu0 0.0
    %546 = vmatpush2.msra.mxu0 0.0
    %547 = vmatprep.mubr.f32.mxu0 0.0
    %548 = vmatmul.mubr.f32.gmra.mxu0 %v481
    %v549 = vpop.f32.mrf.mxu0
    %v550 = vadd.f32 %v362, %v549
    %v551 = vpop.f32.mrf.mxu0
    %v552 = vadd.f32 %v366, %v551
    %553 = vdwg.mxu0
    %554 = vmatprep.subr.mxu0 0.0
    %555 = vmatpush1.msra.mxu0 0.0
    %556 = vmatprep.subr.mxu0 0.0
    %557 = vmatpush1.msra.mxu0 0.0
    %558 = vmatprep.subr.mxu0 0.0
    %559 = vmatpush1.msra.mxu0 0.0
    %560 = vmatprep.subr.mxu0 %v332
    %561 = vmatpush1.msra.mxu0 %v331
    %562 = vmatprep.subr.mxu0 %v308
    %563 = vmatpush1.msra.mxu0 %v307
    %564 = vmatprep.subr.mxu0 %v284
    %565 = vmatpush1.msra.mxu0 %v283
    %566 = vmatprep.subr.mxu0 %v260
    %567 = vmatpush1.msra.mxu0 %v259
    %568 = vmatprep.subr.mxu0 %v236
    %569 = vmatpush1.msra.mxu0 %v235
    %570 = vmatprep.subr.mxu0 %v212
    %571 = vmatpush1.msra.mxu0 %v211
    %572 = vmatprep.subr.mxu0 %v188
    %573 = vmatpush1.msra.mxu0 %v187
    %574 = vmatprep.subr.mxu0 %v164
    %575 = vmatpush1.msra.mxu0 %v163
    %576 = vmatprep.subr.mxu0 %v140
    %577 = vmatpush1.msra.mxu0 %v139
    %578 = vmatprep.subr.mxu0 %v116
    %579 = vmatpush1.msra.mxu0 %v115
    %580 = vmatprep.subr.mxu0 %v92
    %581 = vmatpush1.msra.mxu0 %v91
    %582 = vmatprep.subr.mxu0 %v68
    %583 = vmatpush1.msra.mxu0 %v67
    %584 = vmatprep.subr.mxu0 %v44
    %585 = vmatpush1.msra.mxu0 %v43
    %586 = vmatprep.subr.mxu0 0.0
    %587 = vmatpush2.msra.mxu0 0.0
    %588 = vmatprep.subr.mxu0 0.0
    %589 = vmatpush2.msra.mxu0 0.0
    %590 = vmatprep.subr.mxu0 0.0
    %591 = vmatpush2.msra.mxu0 0.0
    %592 = vmatprep.subr.mxu0 0.0
    %593 = vmatpush2.msra.mxu0 0.0
    %594 = vmatprep.subr.mxu0 0.0
    %595 = vmatpush2.msra.mxu0 0.0
    %596 = vmatprep.subr.mxu0 0.0
    %597 = vmatpush2.msra.mxu0 0.0
    %598 = vmatprep.subr.mxu0 0.0
    %599 = vmatpush2.msra.mxu0 0.0
    %600 = vmatprep.subr.mxu0 0.0
    %601 = vmatpush2.msra.mxu0 0.0
    %602 = vmatprep.subr.mxu0 0.0
    %603 = vmatpush2.msra.mxu0 0.0
    %604 = vmatprep.subr.mxu0 0.0
    %605 = vmatpush2.msra.mxu0 0.0
    %606 = vmatprep.subr.mxu0 0.0
    %607 = vmatpush2.msra.mxu0 0.0
    %608 = vmatprep.subr.mxu0 0.0
    %609 = vmatpush2.msra.mxu0 0.0
    %610 = vmatprep.subr.mxu0 0.0
    %611 = vmatpush2.msra.mxu0 0.0
    %612 = vmatprep.subr.mxu0 0.0
    %613 = vmatpush2.msra.mxu0 0.0
    %614 = vmatprep.subr.mxu0 0.0
    %615 = vmatpush2.msra.mxu0 0.0
    %616 = vmatprep.subr.mxu0 0.0
    %617 = vmatpush2.msra.mxu0 0.0
    %618 = vmatprep.mubr.f32.mxu0 0.0
    %619 = vmatmul.mubr.f32.gmra.mxu0 %v481
    %v620 = vpop.f32.mrf.mxu0
    %v621 = vadd.f32 %v370, %v620
    %v622 = vpop.f32.mrf.mxu0
    %v623 = vadd.f32 %v374, %v622
    %624 = vdwg.mxu0
    %625 = vmatprep.subr.mxu0 0.0
    %626 = vmatpush1.msra.mxu0 0.0
    %627 = vmatprep.subr.mxu0 0.0
    %628 = vmatpush1.msra.mxu0 0.0
    %629 = vmatprep.subr.mxu0 0.0
    %630 = vmatpush1.msra.mxu0 0.0
    %631 = vmatprep.subr.mxu0 %v334
    %632 = vmatpush1.msra.mxu0 %v333
    %633 = vmatprep.subr.mxu0 %v310
    %634 = vmatpush1.msra.mxu0 %v309
    %635 = vmatprep.subr.mxu0 %v286
    %636 = vmatpush1.msra.mxu0 %v285
    %637 = vmatprep.subr.mxu0 %v262
    %638 = vmatpush1.msra.mxu0 %v261
    %639 = vmatprep.subr.mxu0 %v238
    %640 = vmatpush1.msra.mxu0 %v237
    %641 = vmatprep.subr.mxu0 %v214
    %642 = vmatpush1.msra.mxu0 %v213
    %643 = vmatprep.subr.mxu0 %v190
    %644 = vmatpush1.msra.mxu0 %v189
    %645 = vmatprep.subr.mxu0 %v166
    %646 = vmatpush1.msra.mxu0 %v165
    %647 = vmatprep.subr.mxu0 %v142
    %648 = vmatpush1.msra.mxu0 %v141
    %649 = vmatprep.subr.mxu0 %v118
    %650 = vmatpush1.msra.mxu0 %v117
    %651 = vmatprep.subr.mxu0 %v94
    %652 = vmatpush1.msra.mxu0 %v93
    %653 = vmatprep.subr.mxu0 %v70
    %654 = vmatpush1.msra.mxu0 %v69
    %655 = vmatprep.subr.mxu0 %v46
    %656 = vmatpush1.msra.mxu0 %v45
    %657 = vmatprep.subr.mxu0 0.0
    %658 = vmatpush2.msra.mxu0 0.0
    %659 = vmatprep.subr.mxu0 0.0
    %660 = vmatpush2.msra.mxu0 0.0
    %661 = vmatprep.subr.mxu0 0.0
    %662 = vmatpush2.msra.mxu0 0.0
    %663 = vmatprep.subr.mxu0 0.0
    %664 = vmatpush2.msra.mxu0 0.0
    %665 = vmatprep.subr.mxu0 0.0
    %666 = vmatpush2.msra.mxu0 0.0
    %667 = vmatprep.subr.mxu0 0.0
    %668 = vmatpush2.msra.mxu0 0.0
    %669 = vmatprep.subr.mxu0 0.0
    %670 = vmatpush2.msra.mxu0 0.0
    %671 = vmatprep.subr.mxu0 0.0
    %672 = vmatpush2.msra.mxu0 0.0
    %673 = vmatprep.subr.mxu0 0.0
    %674 = vmatpush2.msra.mxu0 0.0
    %675 = vmatprep.subr.mxu0 0.0
    %676 = vmatpush2.msra.mxu0 0.0
    %677 = vmatprep.subr.mxu0 0.0
    %678 = vmatpush2.msra.mxu0 0.0
    %679 = vmatprep.subr.mxu0 0.0
    %680 = vmatpush2.msra.mxu0 0.0
    %681 = vmatprep.subr.mxu0 0.0
    %682 = vmatpush2.msra.mxu0 0.0
    %683 = vmatprep.subr.mxu0 0.0
    %684 = vmatpush2.msra.mxu0 0.0
    %685 = vmatprep.subr.mxu0 0.0
    %686 = vmatpush2.msra.mxu0 0.0
    %687 = vmatprep.subr.mxu0 0.0
    %688 = vmatpush2.msra.mxu0 0.0
    %689 = vmatprep.mubr.f32.mxu0 0.0
    %690 = vmatmul.mubr.f32.gmra.mxu0 %v481
    %v691 = vpop.f32.mrf.mxu0
    %v692 = vadd.f32 %v378, %v691
    %v693 = vpop.f32.mrf.mxu0
    %v694 = vadd.f32 %v382, %v693
    %695 = vdwg.mxu0
    %696 = vmatprep.subr.mxu0 0.0
    %697 = vmatpush1.msra.mxu0 0.0
    %698 = vmatprep.subr.mxu0 0.0
    %699 = vmatpush1.msra.mxu0 0.0
    %700 = vmatprep.subr.mxu0 0.0
    %701 = vmatpush1.msra.mxu0 0.0
    %702 = vmatprep.subr.mxu0 %v336
    %703 = vmatpush1.msra.mxu0 %v335
    %704 = vmatprep.subr.mxu0 %v312
    %705 = vmatpush1.msra.mxu0 %v311
    %706 = vmatprep.subr.mxu0 %v288
    %707 = vmatpush1.msra.mxu0 %v287
    %708 = vmatprep.subr.mxu0 %v264
    %709 = vmatpush1.msra.mxu0 %v263
    %710 = vmatprep.subr.mxu0 %v240
    %711 = vmatpush1.msra.mxu0 %v239
    %712 = vmatprep.subr.mxu0 %v216
    %713 = vmatpush1.msra.mxu0 %v215
    %714 = vmatprep.subr.mxu0 %v192
    %715 = vmatpush1.msra.mxu0 %v191
    %716 = vmatprep.subr.mxu0 %v168
    %717 = vmatpush1.msra.mxu0 %v167
    %718 = vmatprep.subr.mxu0 %v144
    %719 = vmatpush1.msra.mxu0 %v143
    %720 = vmatprep.subr.mxu0 %v120
    %721 = vmatpush1.msra.mxu0 %v119
    %722 = vmatprep.subr.mxu0 %v96
    %723 = vmatpush1.msra.mxu0 %v95
    %724 = vmatprep.subr.mxu0 %v72
    %725 = vmatpush1.msra.mxu0 %v71
    %726 = vmatprep.subr.mxu0 %v48
    %727 = vmatpush1.msra.mxu0 %v47
    %728 = vmatprep.subr.mxu0 0.0
    %729 = vmatpush2.msra.mxu0 0.0
    %730 = vmatprep.subr.mxu0 0.0
    %731 = vmatpush2.msra.mxu0 0.0
    %732 = vmatprep.subr.mxu0 0.0
    %733 = vmatpush2.msra.mxu0 0.0
    %734 = vmatprep.subr.mxu0 0.0
    %735 = vmatpush2.msra.mxu0 0.0
    %736 = vmatprep.subr.mxu0 0.0
    %737 = vmatpush2.msra.mxu0 0.0
    %738 = vmatprep.subr.mxu0 0.0
    %739 = vmatpush2.msra.mxu0 0.0
    %740 = vmatprep.subr.mxu0 0.0
    %741 = vmatpush2.msra.mxu0 0.0
    %742 = vmatprep.subr.mxu0 0.0
    %743 = vmatpush2.msra.mxu0 0.0
    %744 = vmatprep.subr.mxu0 0.0
    %745 = vmatpush2.msra.mxu0 0.0
    %746 = vmatprep.subr.mxu0 0.0
    %747 = vmatpush2.msra.mxu0 0.0
    %748 = vmatprep.subr.mxu0 0.0
    %749 = vmatpush2.msra.mxu0 0.0
    %750 = vmatprep.subr.mxu0 0.0
    %751 = vmatpush2.msra.mxu0 0.0
    %752 = vmatprep.subr.mxu0 0.0
    %753 = vmatpush2.msra.mxu0 0.0
    %754 = vmatprep.subr.mxu0 0.0
    %755 = vmatpush2.msra.mxu0 0.0
    %756 = vmatprep.subr.mxu0 0.0
    %757 = vmatpush2.msra.mxu0 0.0
    %758 = vmatprep.subr.mxu0 0.0
    %759 = vmatpush2.msra.mxu0 0.0
    %760 = vmatprep.mubr.f32.mxu0 0.0
    %761 = vmatmul.mubr.f32.gmra.mxu0 %v481
    %v762 = vpop.f32.mrf.mxu0
    %v763 = vadd.f32 %v386, %v762
    %v764 = vpop.f32.mrf.mxu0
    %v765 = vadd.f32 %v390, %v764
    %766 = vdwg.mxu0
    %767 = vmatprep.subr.mxu0 0.0
    %768 = vmatpush1.msra.mxu0 0.0
    %769 = vmatprep.subr.mxu0 0.0
    %770 = vmatpush1.msra.mxu0 0.0
    %771 = vmatprep.subr.mxu0 0.0
    %772 = vmatpush1.msra.mxu0 0.0
    %773 = vmatprep.subr.mxu0 %v338
    %774 = vmatpush1.msra.mxu0 %v337
    %775 = vmatprep.subr.mxu0 %v314
    %776 = vmatpush1.msra.mxu0 %v313
    %777 = vmatprep.subr.mxu0 %v290
    %778 = vmatpush1.msra.mxu0 %v289
    %779 = vmatprep.subr.mxu0 %v266
    %780 = vmatpush1.msra.mxu0 %v265
    %781 = vmatprep.subr.mxu0 %v242
    %782 = vmatpush1.msra.mxu0 %v241
    %783 = vmatprep.subr.mxu0 %v218
    %784 = vmatpush1.msra.mxu0 %v217
    %785 = vmatprep.subr.mxu0 %v194
    %786 = vmatpush1.msra.mxu0 %v193
    %787 = vmatprep.subr.mxu0 %v170
    %788 = vmatpush1.msra.mxu0 %v169
    %789 = vmatprep.subr.mxu0 %v146
    %790 = vmatpush1.msra.mxu0 %v145
    %791 = vmatprep.subr.mxu0 %v122
    %792 = vmatpush1.msra.mxu0 %v121
    %793 = vmatprep.subr.mxu0 %v98
    %794 = vmatpush1.msra.mxu0 %v97
    %795 = vmatprep.subr.mxu0 %v74
    %796 = vmatpush1.msra.mxu0 %v73
    %797 = vmatprep.subr.mxu0 %v50
    %798 = vmatpush1.msra.mxu0 %v49
    %799 = vmatprep.subr.mxu0 0.0
    %800 = vmatpush2.msra.mxu0 0.0
    %801 = vmatprep.subr.mxu0 0.0
    %802 = vmatpush2.msra.mxu0 0.0
    %803 = vmatprep.subr.mxu0 0.0
    %804 = vmatpush2.msra.mxu0 0.0
    %805 = vmatprep.subr.mxu0 0.0
    %806 = vmatpush2.msra.mxu0 0.0
    %807 = vmatprep.subr.mxu0 0.0
    %808 = vmatpush2.msra.mxu0 0.0
    %809 = vmatprep.subr.mxu0 0.0
    %810 = vmatpush2.msra.mxu0 0.0
    %811 = vmatprep.subr.mxu0 0.0
    %812 = vmatpush2.msra.mxu0 0.0
    %813 = vmatprep.subr.mxu0 0.0
    %814 = vmatpush2.msra.mxu0 0.0
    %815 = vmatprep.subr.mxu0 0.0
    %816 = vmatpush2.msra.mxu0 0.0
    %817 = vmatprep.subr.mxu0 0.0
    %818 = vmatpush2.msra.mxu0 0.0
    %819 = vmatprep.subr.mxu0 0.0
    %820 = vmatpush2.msra.mxu0 0.0
    %821 = vmatprep.subr.mxu0 0.0
    %822 = vmatpush2.msra.mxu0 0.0
    %823 = vmatprep.subr.mxu0 0.0
    %824 = vmatpush2.msra.mxu0 0.0
    %825 = vmatprep.subr.mxu0 0.0
    %826 = vmatpush2.msra.mxu0 0.0
    %827 = vmatprep.subr.mxu0 0.0
    %828 = vmatpush2.msra.mxu0 0.0
    %829 = vmatprep.subr.mxu0 0.0
    %830 = vmatpush2.msra.mxu0 0.0
    %831 = vmatprep.mubr.f32.mxu0 0.0
    %832 = vmatmul.mubr.f32.gmra.mxu0 %v481
    %v833 = vpop.f32.mrf.mxu0
    %v834 = vadd.f32 %v394, %v833
    %v835 = vpop.f32.mrf.mxu0
    %v836 = vadd.f32 %v398, %v835
    %837 = vdwg.mxu0
    %838 = vmatprep.subr.mxu0 0.0
    %839 = vmatpush1.msra.mxu0 0.0
    %840 = vmatprep.subr.mxu0 0.0
    %841 = vmatpush1.msra.mxu0 0.0
    %842 = vmatprep.subr.mxu0 0.0
    %843 = vmatpush1.msra.mxu0 0.0
    %844 = vmatprep.subr.mxu0 %v340
    %845 = vmatpush1.msra.mxu0 %v339
    %846 = vmatprep.subr.mxu0 %v316
    %847 = vmatpush1.msra.mxu0 %v315
    %848 = vmatprep.subr.mxu0 %v292
    %849 = vmatpush1.msra.mxu0 %v291
    %850 = vmatprep.subr.mxu0 %v268
    %851 = vmatpush1.msra.mxu0 %v267
    %852 = vmatprep.subr.mxu0 %v244
    %853 = vmatpush1.msra.mxu0 %v243
    %854 = vmatprep.subr.mxu0 %v220
    %855 = vmatpush1.msra.mxu0 %v219
    %856 = vmatprep.subr.mxu0 %v196
    %857 = vmatpush1.msra.mxu0 %v195
    %858 = vmatprep.subr.mxu0 %v172
    %859 = vmatpush1.msra.mxu0 %v171
    %860 = vmatprep.subr.mxu0 %v148
    %861 = vmatpush1.msra.mxu0 %v147
    %862 = vmatprep.subr.mxu0 %v124
    %863 = vmatpush1.msra.mxu0 %v123
    %864 = vmatprep.subr.mxu0 %v100
    %865 = vmatpush1.msra.mxu0 %v99
    %866 = vmatprep.subr.mxu0 %v76
    %867 = vmatpush1.msra.mxu0 %v75
    %868 = vmatprep.subr.mxu0 %v52
    %869 = vmatpush1.msra.mxu0 %v51
    %870 = vmatprep.subr.mxu0 0.0
    %871 = vmatpush2.msra.mxu0 0.0
    %872 = vmatprep.subr.mxu0 0.0
    %873 = vmatpush2.msra.mxu0 0.0
    %874 = vmatprep.subr.mxu0 0.0
    %875 = vmatpush2.msra.mxu0 0.0
    %876 = vmatprep.subr.mxu0 0.0
    %877 = vmatpush2.msra.mxu0 0.0
    %878 = vmatprep.subr.mxu0 0.0
    %879 = vmatpush2.msra.mxu0 0.0
    %880 = vmatprep.subr.mxu0 0.0
    %881 = vmatpush2.msra.mxu0 0.0
    %882 = vmatprep.subr.mxu0 0.0
    %883 = vmatpush2.msra.mxu0 0.0
    %884 = vmatprep.subr.mxu0 0.0
    %885 = vmatpush2.msra.mxu0 0.0
    %886 = vmatprep.subr.mxu0 0.0
    %887 = vmatpush2.msra.mxu0 0.0
    %888 = vmatprep.subr.mxu0 0.0
    %889 = vmatpush2.msra.mxu0 0.0
    %890 = vmatprep.subr.mxu0 0.0
    %891 = vmatpush2.msra.mxu0 0.0
    %892 = vmatprep.subr.mxu0 0.0
    %893 = vmatpush2.msra.mxu0 0.0
    %894 = vmatprep.subr.mxu0 0.0
    %895 = vmatpush2.msra.mxu0 0.0
    %896 = vmatprep.subr.mxu0 0.0
    %897 = vmatpush2.msra.mxu0 0.0
    %898 = vmatprep.subr.mxu0 0.0
    %899 = vmatpush2.msra.mxu0 0.0
    %900 = vmatprep.subr.mxu0 0.0
    %901 = vmatpush2.msra.mxu0 0.0
    %902 = vmatprep.mubr.f32.mxu0 0.0
    %903 = vmatmul.mubr.f32.gmra.mxu0 %v481
    %v904 = vpop.f32.mrf.mxu0
    %v905 = vadd.f32 %v402, %v904
    %v906 = vpop.f32.mrf.mxu0
    %v907 = vadd.f32 %v406, %v906
    %908 = vdwg.mxu0
    %909 = vmatprep.subr.mxu0 0.0
    %910 = vmatpush1.msra.mxu0 0.0
    %911 = vmatprep.subr.mxu0 0.0
    %912 = vmatpush1.msra.mxu0 0.0
    %913 = vmatprep.subr.mxu0 0.0
    %914 = vmatpush1.msra.mxu0 0.0
    %915 = vmatprep.subr.mxu0 %v342
    %916 = vmatpush1.msra.mxu0 %v341
    %917 = vmatprep.subr.mxu0 %v318
    %918 = vmatpush1.msra.mxu0 %v317
    %919 = vmatprep.subr.mxu0 %v294
    %920 = vmatpush1.msra.mxu0 %v293
    %921 = vmatprep.subr.mxu0 %v270
    %922 = vmatpush1.msra.mxu0 %v269
    %923 = vmatprep.subr.mxu0 %v246
    %924 = vmatpush1.msra.mxu0 %v245
    %925 = vmatprep.subr.mxu0 %v222
    %926 = vmatpush1.msra.mxu0 %v221
    %927 = vmatprep.subr.mxu0 %v198
    %928 = vmatpush1.msra.mxu0 %v197
    %929 = vmatprep.subr.mxu0 %v174
    %930 = vmatpush1.msra.mxu0 %v173
    %931 = vmatprep.subr.mxu0 %v150
    %932 = vmatpush1.msra.mxu0 %v149
    %933 = vmatprep.subr.mxu0 %v126
    %934 = vmatpush1.msra.mxu0 %v125
    %935 = vmatprep.subr.mxu0 %v102
    %936 = vmatpush1.msra.mxu0 %v101
    %937 = vmatprep.subr.mxu0 %v78
    %938 = vmatpush1.msra.mxu0 %v77
    %939 = vmatprep.subr.mxu0 %v54
    %940 = vmatpush1.msra.mxu0 %v53
    %941 = vmatprep.subr.mxu0 0.0
    %942 = vmatpush2.msra.mxu0 0.0
    %943 = vmatprep.subr.mxu0 0.0
    %944 = vmatpush2.msra.mxu0 0.0
    %945 = vmatprep.subr.mxu0 0.0
    %946 = vmatpush2.msra.mxu0 0.0
    %947 = vmatprep.subr.mxu0 0.0
    %948 = vmatpush2.msra.mxu0 0.0
    %949 = vmatprep.subr.mxu0 0.0
    %950 = vmatpush2.msra.mxu0 0.0
    %951 = vmatprep.subr.mxu0 0.0
    %952 = vmatpush2.msra.mxu0 0.0
    %953 = vmatprep.subr.mxu0 0.0
    %954 = vmatpush2.msra.mxu0 0.0
    %955 = vmatprep.subr.mxu0 0.0
    %956 = vmatpush2.msra.mxu0 0.0
    %957 = vmatprep.subr.mxu0 0.0
    %958 = vmatpush2.msra.mxu0 0.0
    %959 = vmatprep.subr.mxu0 0.0
    %960 = vmatpush2.msra.mxu0 0.0
    %961 = vmatprep.subr.mxu0 0.0
    %962 = vmatpush2.msra.mxu0 0.0
    %963 = vmatprep.subr.mxu0 0.0
    %964 = vmatpush2.msra.mxu0 0.0
    %965 = vmatprep.subr.mxu0 0.0
    %966 = vmatpush2.msra.mxu0 0.0
    %967 = vmatprep.subr.mxu0 0.0
    %968 = vmatpush2.msra.mxu0 0.0
    %969 = vmatprep.subr.mxu0 0.0
    %970 = vmatpush2.msra.mxu0 0.0
    %971 = vmatprep.subr.mxu0 0.0
    %972 = vmatpush2.msra.mxu0 0.0
    %973 = vmatprep.mubr.f32.mxu0 0.0
    %974 = vmatmul.mubr.f32.gmra.mxu0 %v481
    %v975 = vpop.f32.mrf.mxu0
    %v976 = vadd.f32 %v410, %v975
    %v977 = vpop.f32.mrf.mxu0
    %v978 = vadd.f32 %v414, %v977
    %979 = vdwg.mxu0
    %980 = vmatprep.subr.mxu0 0.0
    %981 = vmatpush1.msra.mxu0 0.0
    %982 = vmatprep.subr.mxu0 0.0
    %983 = vmatpush1.msra.mxu0 0.0
    %984 = vmatprep.subr.mxu0 0.0
    %985 = vmatpush1.msra.mxu0 0.0
    %986 = vmatprep.subr.mxu0 %v344
    %987 = vmatpush1.msra.mxu0 %v343
    %988 = vmatprep.subr.mxu0 %v320
    %989 = vmatpush1.msra.mxu0 %v319
    %990 = vmatprep.subr.mxu0 %v296
    %991 = vmatpush1.msra.mxu0 %v295
    %992 = vmatprep.subr.mxu0 %v272
    %993 = vmatpush1.msra.mxu0 %v271
    %994 = vmatprep.subr.mxu0 %v248
    %995 = vmatpush1.msra.mxu0 %v247
    %996 = vmatprep.subr.mxu0 %v224
    %997 = vmatpush1.msra.mxu0 %v223
    %998 = vmatprep.subr.mxu0 %v200
    %999 = vmatpush1.msra.mxu0 %v199
    %1000 = vmatprep.subr.mxu0 %v176
    %1001 = vmatpush1.msra.mxu0 %v175
    %1002 = vmatprep.subr.mxu0 %v152
    %1003 = vmatpush1.msra.mxu0 %v151
    %1004 = vmatprep.subr.mxu0 %v128
    %1005 = vmatpush1.msra.mxu0 %v127
    %1006 = vmatprep.subr.mxu0 %v104
    %1007 = vmatpush1.msra.mxu0 %v103
    %1008 = vmatprep.subr.mxu0 %v80
    %1009 = vmatpush1.msra.mxu0 %v79
    %1010 = vmatprep.subr.mxu0 %v56
    %1011 = vmatpush1.msra.mxu0 %v55
    %1012 = vmatprep.subr.mxu0 0.0
    %1013 = vmatpush2.msra.mxu0 0.0
    %1014 = vmatprep.subr.mxu0 0.0
    %1015 = vmatpush2.msra.mxu0 0.0
    %1016 = vmatprep.subr.mxu0 0.0
    %1017 = vmatpush2.msra.mxu0 0.0
    %1018 = vmatprep.subr.mxu0 0.0
    %1019 = vmatpush2.msra.mxu0 0.0
    %1020 = vmatprep.subr.mxu0 0.0
    %1021 = vmatpush2.msra.mxu0 0.0
    %1022 = vmatprep.subr.mxu0 0.0
    %1023 = vmatpush2.msra.mxu0 0.0
    %1024 = vmatprep.subr.mxu0 0.0
    %1025 = vmatpush2.msra.mxu0 0.0
    %1026 = vmatprep.subr.mxu0 0.0
    %1027 = vmatpush2.msra.mxu0 0.0
    %1028 = vmatprep.subr.mxu0 0.0
    %1029 = vmatpush2.msra.mxu0 0.0
    %1030 = vmatprep.subr.mxu0 0.0
    %1031 = vmatpush2.msra.mxu0 0.0
    %1032 = vmatprep.subr.mxu0 0.0
    %1033 = vmatpush2.msra.mxu0 0.0
    %1034 = vmatprep.subr.mxu0 0.0
    %1035 = vmatpush2.msra.mxu0 0.0
    %1036 = vmatprep.subr.mxu0 0.0
    %1037 = vmatpush2.msra.mxu0 0.0
    %1038 = vmatprep.subr.mxu0 0.0
    %1039 = vmatpush2.msra.mxu0 0.0
    %1040 = vmatprep.subr.mxu0 0.0
    %1041 = vmatpush2.msra.mxu0 0.0
    %1042 = vmatprep.subr.mxu0 0.0
    %1043 = vmatpush2.msra.mxu0 0.0
    %1044 = vmatprep.mubr.f32.mxu0 0.0
    %1045 = vmatmul.mubr.f32.gmra.mxu0 %v481
    %v1046 = vpop.f32.mrf.mxu0
    %v1047 = vadd.f32 %v418, %v1046
    %v1048 = vpop.f32.mrf.mxu0
    %v1049 = vadd.f32 %v422, %v1048
    %1050 = vdwg.mxu0
    %1051 = vmatprep.subr.mxu0 0.0
    %1052 = vmatpush1.msra.mxu0 0.0
    %1053 = vmatprep.subr.mxu0 0.0
    %1054 = vmatpush1.msra.mxu0 0.0
    %1055 = vmatprep.subr.mxu0 0.0
    %1056 = vmatpush1.msra.mxu0 0.0
    %1057 = vmatprep.subr.mxu0 %v346
    %1058 = vmatpush1.msra.mxu0 %v345
    %1059 = vmatprep.subr.mxu0 %v322
    %1060 = vmatpush1.msra.mxu0 %v321
    %1061 = vmatprep.subr.mxu0 %v298
    %1062 = vmatpush1.msra.mxu0 %v297
    %1063 = vmatprep.subr.mxu0 %v274
    %1064 = vmatpush1.msra.mxu0 %v273
    %1065 = vmatprep.subr.mxu0 %v250
    %1066 = vmatpush1.msra.mxu0 %v249
    %1067 = vmatprep.subr.mxu0 %v226
    %1068 = vmatpush1.msra.mxu0 %v225
    %1069 = vmatprep.subr.mxu0 %v202
    %1070 = vmatpush1.msra.mxu0 %v201
    %1071 = vmatprep.subr.mxu0 %v178
    %1072 = vmatpush1.msra.mxu0 %v177
    %1073 = vmatprep.subr.mxu0 %v154
    %1074 = vmatpush1.msra.mxu0 %v153
    %1075 = vmatprep.subr.mxu0 %v130
    %1076 = vmatpush1.msra.mxu0 %v129
    %1077 = vmatprep.subr.mxu0 %v106
    %1078 = vmatpush1.msra.mxu0 %v105
    %1079 = vmatprep.subr.mxu0 %v82
    %1080 = vmatpush1.msra.mxu0 %v81
    %1081 = vmatprep.subr.mxu0 %v58
    %1082 = vmatpush1.msra.mxu0 %v57
    %1083 = vmatprep.subr.mxu0 0.0
    %1084 = vmatpush2.msra.mxu0 0.0
    %1085 = vmatprep.subr.mxu0 0.0
    %1086 = vmatpush2.msra.mxu0 0.0
    %1087 = vmatprep.subr.mxu0 0.0
    %1088 = vmatpush2.msra.mxu0 0.0
    %1089 = vmatprep.subr.mxu0 0.0
    %1090 = vmatpush2.msra.mxu0 0.0
    %1091 = vmatprep.subr.mxu0 0.0
    %1092 = vmatpush2.msra.mxu0 0.0
    %1093 = vmatprep.subr.mxu0 0.0
    %1094 = vmatpush2.msra.mxu0 0.0
    %1095 = vmatprep.subr.mxu0 0.0
    %1096 = vmatpush2.msra.mxu0 0.0
    %1097 = vmatprep.subr.mxu0 0.0
    %1098 = vmatpush2.msra.mxu0 0.0
    %1099 = vmatprep.subr.mxu0 0.0
    %1100 = vmatpush2.msra.mxu0 0.0
    %1101 = vmatprep.subr.mxu0 0.0
    %1102 = vmatpush2.msra.mxu0 0.0
    %1103 = vmatprep.subr.mxu0 0.0
    %1104 = vmatpush2.msra.mxu0 0.0
    %1105 = vmatprep.subr.mxu0 0.0
    %1106 = vmatpush2.msra.mxu0 0.0
    %1107 = vmatprep.subr.mxu0 0.0
    %1108 = vmatpush2.msra.mxu0 0.0
    %1109 = vmatprep.subr.mxu0 0.0
    %1110 = vmatpush2.msra.mxu0 0.0
    %1111 = vmatprep.subr.mxu0 0.0
    %1112 = vmatpush2.msra.mxu0 0.0
    %1113 = vmatprep.subr.mxu0 0.0
    %1114 = vmatpush2.msra.mxu0 0.0
    %1115 = vmatprep.mubr.f32.mxu0 0.0
    %1116 = vmatmul.mubr.f32.gmra.mxu0 %v481
    %v1117 = vpop.f32.mrf.mxu0
    %v1118 = vadd.f32 %v426, %v1117
    %v1119 = vpop.f32.mrf.mxu0
    %v1120 = vadd.f32 %v430, %v1119
    %1121 = vdwg.mxu0
    %1122 = vmatprep.subr.mxu0 0.0
    %1123 = vmatpush1.msra.mxu0 0.0
    %1124 = vmatprep.subr.mxu0 0.0
    %1125 = vmatpush1.msra.mxu0 0.0
    %1126 = vmatprep.subr.mxu0 0.0
    %1127 = vmatpush1.msra.mxu0 0.0
    %1128 = vmatprep.subr.mxu0 %v348
    %1129 = vmatpush1.msra.mxu0 %v347
    %1130 = vmatprep.subr.mxu0 %v324
    %1131 = vmatpush1.msra.mxu0 %v323
    %1132 = vmatprep.subr.mxu0 %v300
    %1133 = vmatpush1.msra.mxu0 %v299
    %1134 = vmatprep.subr.mxu0 %v276
    %1135 = vmatpush1.msra.mxu0 %v275
    %1136 = vmatprep.subr.mxu0 %v252
    %1137 = vmatpush1.msra.mxu0 %v251
    %1138 = vmatprep.subr.mxu0 %v228
    %1139 = vmatpush1.msra.mxu0 %v227
    %1140 = vmatprep.subr.mxu0 %v204
    %1141 = vmatpush1.msra.mxu0 %v203
    %1142 = vmatprep.subr.mxu0 %v180
    %1143 = vmatpush1.msra.mxu0 %v179
    %1144 = vmatprep.subr.mxu0 %v156
    %1145 = vmatpush1.msra.mxu0 %v155
    %1146 = vmatprep.subr.mxu0 %v132
    %1147 = vmatpush1.msra.mxu0 %v131
    %1148 = vmatprep.subr.mxu0 %v108
    %1149 = vmatpush1.msra.mxu0 %v107
    %1150 = vmatprep.subr.mxu0 %v84
    %1151 = vmatpush1.msra.mxu0 %v83
    %1152 = vmatprep.subr.mxu0 %v60
    %1153 = vmatpush1.msra.mxu0 %v59
    %1154 = vmatprep.subr.mxu0 0.0
    %1155 = vmatpush2.msra.mxu0 0.0
    %1156 = vmatprep.subr.mxu0 0.0
    %1157 = vmatpush2.msra.mxu0 0.0
    %1158 = vmatprep.subr.mxu0 0.0
    %1159 = vmatpush2.msra.mxu0 0.0
    %1160 = vmatprep.subr.mxu0 0.0
    %1161 = vmatpush2.msra.mxu0 0.0
    %1162 = vmatprep.subr.mxu0 0.0
    %1163 = vmatpush2.msra.mxu0 0.0
    %1164 = vmatprep.subr.mxu0 0.0
    %1165 = vmatpush2.msra.mxu0 0.0
    %1166 = vmatprep.subr.mxu0 0.0
    %1167 = vmatpush2.msra.mxu0 0.0
    %1168 = vmatprep.subr.mxu0 0.0
    %1169 = vmatpush2.msra.mxu0 0.0
    %1170 = vmatprep.subr.mxu0 0.0
    %1171 = vmatpush2.msra.mxu0 0.0
    %1172 = vmatprep.subr.mxu0 0.0
    %1173 = vmatpush2.msra.mxu0 0.0
    %1174 = vmatprep.subr.mxu0 0.0
    %1175 = vmatpush2.msra.mxu0 0.0
    %1176 = vmatprep.subr.mxu0 0.0
    %1177 = vmatpush2.msra.mxu0 0.0
    %1178 = vmatprep.subr.mxu0 0.0
    %1179 = vmatpush2.msra.mxu0 0.0
    %1180 = vmatprep.subr.mxu0 0.0
    %1181 = vmatpush2.msra.mxu0 0.0
    %1182 = vmatprep.subr.mxu0 0.0
    %1183 = vmatpush2.msra.mxu0 0.0
    %1184 = vmatprep.subr.mxu0 0.0
    %1185 = vmatpush2.msra.mxu0 0.0
    %1186 = vmatprep.mubr.f32.mxu0 0.0
    %1187 = vmatmul.mubr.f32.gmra.mxu0 %v481
    %v1188 = vpop.f32.mrf.mxu0
    %v1189 = vadd.f32 %v434, %v1188
    %v1190 = vpop.f32.mrf.mxu0
    %v1191 = vadd.f32 %v438, %v1190
    %1192 = vdwg.mxu0
    %1193 = vmatprep.subr.mxu0 0.0
    %1194 = vmatpush1.msra.mxu0 0.0
    %1195 = vmatprep.subr.mxu0 0.0
    %1196 = vmatpush1.msra.mxu0 0.0
    %1197 = vmatprep.subr.mxu0 0.0
    %1198 = vmatpush1.msra.mxu0 0.0
    %1199 = vmatprep.subr.mxu0 %v350
    %1200 = vmatpush1.msra.mxu0 %v349
    %1201 = vmatprep.subr.mxu0 %v326
    %1202 = vmatpush1.msra.mxu0 %v325
    %1203 = vmatprep.subr.mxu0 %v302
    %1204 = vmatpush1.msra.mxu0 %v301
    %1205 = vmatprep.subr.mxu0 %v278
    %1206 = vmatpush1.msra.mxu0 %v277
    %1207 = vmatprep.subr.mxu0 %v254
    %1208 = vmatpush1.msra.mxu0 %v253
    %1209 = vmatprep.subr.mxu0 %v230
    %1210 = vmatpush1.msra.mxu0 %v229
    %1211 = vmatprep.subr.mxu0 %v206
    %1212 = vmatpush1.msra.mxu0 %v205
    %1213 = vmatprep.subr.mxu0 %v182
    %1214 = vmatpush1.msra.mxu0 %v181
    %1215 = vmatprep.subr.mxu0 %v158
    %1216 = vmatpush1.msra.mxu0 %v157
    %1217 = vmatprep.subr.mxu0 %v134
    %1218 = vmatpush1.msra.mxu0 %v133
    %1219 = vmatprep.subr.mxu0 %v110
    %1220 = vmatpush1.msra.mxu0 %v109
    %1221 = vmatprep.subr.mxu0 %v86
    %1222 = vmatpush1.msra.mxu0 %v85
    %1223 = vmatprep.subr.mxu0 %v62
    %1224 = vmatpush1.msra.mxu0 %v61
    %1225 = vmatprep.subr.mxu0 0.0
    %1226 = vmatpush2.msra.mxu0 0.0
    %1227 = vmatprep.subr.mxu0 0.0
    %1228 = vmatpush2.msra.mxu0 0.0
    %1229 = vmatprep.subr.mxu0 0.0
    %1230 = vmatpush2.msra.mxu0 0.0
    %1231 = vmatprep.subr.mxu0 0.0
    %1232 = vmatpush2.msra.mxu0 0.0
    %1233 = vmatprep.subr.mxu0 0.0
    %1234 = vmatpush2.msra.mxu0 0.0
    %1235 = vmatprep.subr.mxu0 0.0
    %1236 = vmatpush2.msra.mxu0 0.0
    %1237 = vmatprep.subr.mxu0 0.0
    %1238 = vmatpush2.msra.mxu0 0.0
    %1239 = vmatprep.subr.mxu0 0.0
    %1240 = vmatpush2.msra.mxu0 0.0
    %1241 = vmatprep.subr.mxu0 0.0
    %1242 = vmatpush2.msra.mxu0 0.0
    %1243 = vmatprep.subr.mxu0 0.0
    %1244 = vmatpush2.msra.mxu0 0.0
    %1245 = vmatprep.subr.mxu0 0.0
    %1246 = vmatpush2.msra.mxu0 0.0
    %1247 = vmatprep.subr.mxu0 0.0
    %1248 = vmatpush2.msra.mxu0 0.0
    %1249 = vmatprep.subr.mxu0 0.0
    %1250 = vmatpush2.msra.mxu0 0.0
    %1251 = vmatprep.subr.mxu0 0.0
    %1252 = vmatpush2.msra.mxu0 0.0
    %1253 = vmatprep.subr.mxu0 0.0
    %1254 = vmatpush2.msra.mxu0 0.0
    %1255 = vmatprep.subr.mxu0 0.0
    %1256 = vmatpush2.msra.mxu0 0.0
    %1257 = vmatprep.mubr.f32.mxu0 0.0
    %1258 = vmatmul.mubr.f32.gmra.mxu0 %v481
    %v1259 = vpop.f32.mrf.mxu0
    %v1260 = vadd.f32 %v442, %v1259
    %v1261 = vpop.f32.mrf.mxu0
    %v1262 = vadd.f32 %v446, %v1261
    %1263 = vdwg.mxu0
    %1264 = vmatprep.subr.mxu0 0.0
    %1265 = vmatpush1.msra.mxu0 0.0
    %1266 = vmatprep.subr.mxu0 0.0
    %1267 = vmatpush1.msra.mxu0 0.0
    %1268 = vmatprep.subr.mxu0 0.0
    %1269 = vmatpush1.msra.mxu0 0.0
    %1270 = vmatprep.subr.mxu0 %v352
    %1271 = vmatpush1.msra.mxu0 %v351
    %1272 = vmatprep.subr.mxu0 %v328
    %1273 = vmatpush1.msra.mxu0 %v327
    %1274 = vmatprep.subr.mxu0 %v304
    %1275 = vmatpush1.msra.mxu0 %v303
    %1276 = vmatprep.subr.mxu0 %v280
    %1277 = vmatpush1.msra.mxu0 %v279
    %1278 = vmatprep.subr.mxu0 %v256
    %1279 = vmatpush1.msra.mxu0 %v255
    %1280 = vmatprep.subr.mxu0 %v232
    %1281 = vmatpush1.msra.mxu0 %v231
    %1282 = vmatprep.subr.mxu0 %v208
    %1283 = vmatpush1.msra.mxu0 %v207
    %1284 = vmatprep.subr.mxu0 %v184
    %1285 = vmatpush1.msra.mxu0 %v183
    %1286 = vmatprep.subr.mxu0 %v160
    %1287 = vmatpush1.msra.mxu0 %v159
    %1288 = vmatprep.subr.mxu0 %v136
    %1289 = vmatpush1.msra.mxu0 %v135
    %1290 = vmatprep.subr.mxu0 %v112
    %1291 = vmatpush1.msra.mxu0 %v111
    %1292 = vmatprep.subr.mxu0 %v88
    %1293 = vmatpush1.msra.mxu0 %v87
    %1294 = vmatprep.subr.mxu0 %v64
    %1295 = vmatpush1.msra.mxu0 %v63
    %1296 = vmatprep.subr.mxu0 0.0
    %1297 = vmatpush2.msra.mxu0 0.0
    %1298 = vmatprep.subr.mxu0 0.0
    %1299 = vmatpush2.msra.mxu0 0.0
    %1300 = vmatprep.subr.mxu0 0.0
    %1301 = vmatpush2.msra.mxu0 0.0
    %1302 = vmatprep.subr.mxu0 0.0
    %1303 = vmatpush2.msra.mxu0 0.0
    %1304 = vmatprep.subr.mxu0 0.0
    %1305 = vmatpush2.msra.mxu0 0.0
    %1306 = vmatprep.subr.mxu0 0.0
    %1307 = vmatpush2.msra.mxu0 0.0
    %1308 = vmatprep.subr.mxu0 0.0
    %1309 = vmatpush2.msra.mxu0 0.0
    %1310 = vmatprep.subr.mxu0 0.0
    %1311 = vmatpush2.msra.mxu0 0.0
    %1312 = vmatprep.subr.mxu0 0.0
    %1313 = vmatpush2.msra.mxu0 0.0
    %1314 = vmatprep.subr.mxu0 0.0
    %1315 = vmatpush2.msra.mxu0 0.0
    %1316 = vmatprep.subr.mxu0 0.0
    %1317 = vmatpush2.msra.mxu0 0.0
    %1318 = vmatprep.subr.mxu0 0.0
    %1319 = vmatpush2.msra.mxu0 0.0
    %1320 = vmatprep.subr.mxu0 0.0
    %1321 = vmatpush2.msra.mxu0 0.0
    %1322 = vmatprep.subr.mxu0 0.0
    %1323 = vmatpush2.msra.mxu0 0.0
    %1324 = vmatprep.subr.mxu0 0.0
    %1325 = vmatpush2.msra.mxu0 0.0
    %1326 = vmatprep.subr.mxu0 0.0
    %1327 = vmatpush2.msra.mxu0 0.0
    %1328 = vmatprep.mubr.f32.mxu0 0.0
    %1329 = vmatmul.mubr.f32.gmra.mxu0 %v481
    %v1330 = vpop.f32.mrf.mxu0
    %v1331 = vadd.f32 %v450, %v1330
    %v1332 = vpop.f32.mrf.mxu0
    %v1333 = vadd.f32 %v454, %v1332
    %1334 = vdwg.mxu0
    %v1359 = vcombine.low %v550, %v552
    %v1360 = vcombine.low %v621, %v623
    %v1361 = vcombine.low %v692, %v694
    %v1362 = vcombine.low %v763, %v765
    %v1364 = vunpack.c.l.s4 1966171168
    %v1365 = vunpack.c.0.s8 %v1364
    %v1366 = vlaneseq
    %v1367 = vshrl.u32 %v1366, 7
    %v1368 = vsub.s32 %v1365, %v1367
    %v1369 = vrot.slane %v1359, %v1368
    %v1371 = vunpack.c.l.s4 1966171168
    %v1372 = vunpack.c.0.s8 %v1371
    %v1373 = vlaneseq
    %v1374 = vshrl.u32 %v1373, 7
    %v1375 = vsub.s32 %v1372, %v1374
    %v1376 = vrot.slane %v1360, %v1375
    %v1378 = vunpack.c.l.s4 1966171168
    %v1379 = vunpack.c.0.s8 %v1378
    %v1380 = vlaneseq
    %v1381 = vshrl.u32 %v1380, 7
    %v1382 = vsub.s32 %v1379, %v1381
    %v1383 = vrot.slane %v1361, %v1382
    %v1385 = vunpack.c.l.s4 1966171168
    %v1386 = vunpack.c.0.s8 %v1385
    %v1387 = vlaneseq
    %v1388 = vshrl.u32 %v1387, 7
    %v1389 = vsub.s32 %v1386, %v1388
    %v1390 = vrot.slane %v1362, %v1389
    %v1391 = vcombine.low %v1369, %v1376
    %v1392 = vcombine.low %v1383, %v1390
    %v1394 = vunpack.c.l.s4 1966171168
    %v1395 = vunpack.c.0.s8 %v1394
    %v1396 = vlaneseq
    %v1397 = vshrl.u32 %v1396, 7
    %v1398 = vsub.s32 %v1395, %v1397
    %v1399 = vrot.slane %v1391, %v1398
    %v1401 = vunpack.c.l.s4 1966171168
    %v1402 = vunpack.c.0.s8 %v1401
    %v1403 = vlaneseq
    %v1404 = vshrl.u32 %v1403, 7
    %v1405 = vsub.s32 %v1402, %v1404
    %v1406 = vrot.slane %v1392, %v1405
    %v1407 = vcombine.low %v1399, %v1406
    %v1408 = vcombine.low %v834, %v836
    %v1409 = vcombine.low %v905, %v907
    %v1410 = vcombine.low %v976, %v978
    %v1411 = vcombine.low %v1047, %v1049
    %v1413 = vunpack.c.l.s4 1966171168
    %v1414 = vunpack.c.0.s8 %v1413
    %v1415 = vlaneseq
    %v1416 = vshrl.u32 %v1415, 7
    %v1417 = vsub.s32 %v1414, %v1416
    %v1418 = vrot.slane %v1408, %v1417
    %v1420 = vunpack.c.l.s4 1966171168
    %v1421 = vunpack.c.0.s8 %v1420
    %v1422 = vlaneseq
    %v1423 = vshrl.u32 %v1422, 7
    %v1424 = vsub.s32 %v1421, %v1423
    %v1425 = vrot.slane %v1409, %v1424
    %v1427 = vunpack.c.l.s4 1966171168
    %v1428 = vunpack.c.0.s8 %v1427
    %v1429 = vlaneseq
    %v1430 = vshrl.u32 %v1429, 7
    %v1431 = vsub.s32 %v1428, %v1430
    %v1432 = vrot.slane %v1410, %v1431
    %v1434 = vunpack.c.l.s4 1966171168
    %v1435 = vunpack.c.0.s8 %v1434
    %v1436 = vlaneseq
    %v1437 = vshrl.u32 %v1436, 7
    %v1438 = vsub.s32 %v1435, %v1437
    %v1439 = vrot.slane %v1411, %v1438
    %v1440 = vcombine.low %v1418, %v1425
    %v1441 = vcombine.low %v1432, %v1439
    %v1443 = vunpack.c.l.s4 1966171168
    %v1444 = vunpack.c.0.s8 %v1443
    %v1445 = vlaneseq
    %v1446 = vshrl.u32 %v1445, 7
    %v1447 = vsub.s32 %v1444, %v1446
    %v1448 = vrot.slane %v1440, %v1447
    %v1450 = vunpack.c.l.s4 1966171168
    %v1451 = vunpack.c.0.s8 %v1450
    %v1452 = vlaneseq
    %v1453 = vshrl.u32 %v1452, 7
    %v1454 = vsub.s32 %v1451, %v1453
    %v1455 = vrot.slane %v1441, %v1454
    %v1456 = vcombine.low %v1448, %v1455
    %v1457 = vcombine.low %v1118, %v1120
    %v1458 = vcombine.low %v1189, %v1191
    %v1459 = vcombine.low %v1260, %v1262
    %v1460 = vcombine.low %v1331, %v1333
    %v1462 = vunpack.c.l.s4 1966171168
    %v1463 = vunpack.c.0.s8 %v1462
    %v1464 = vlaneseq
    %v1465 = vshrl.u32 %v1464, 7
    %v1466 = vsub.s32 %v1463, %v1465
    %v1467 = vrot.slane %v1457, %v1466
    %v1469 = vunpack.c.l.s4 1966171168
    %v1470 = vunpack.c.0.s8 %v1469
    %v1471 = vlaneseq
    %v1472 = vshrl.u32 %v1471, 7
    %v1473 = vsub.s32 %v1470, %v1472
    %v1474 = vrot.slane %v1458, %v1473
    %v1476 = vunpack.c.l.s4 1966171168
    %v1477 = vunpack.c.0.s8 %v1476
    %v1478 = vlaneseq
    %v1479 = vshrl.u32 %v1478, 7
    %v1480 = vsub.s32 %v1477, %v1479
    %v1481 = vrot.slane %v1459, %v1480
    %v1483 = vunpack.c.l.s4 1966171168
    %v1484 = vunpack.c.0.s8 %v1483
    %v1485 = vlaneseq
    %v1486 = vshrl.u32 %v1485, 7
    %v1487 = vsub.s32 %v1484, %v1486
    %v1488 = vrot.slane %v1460, %v1487
    %v1489 = vcombine.low %v1467, %v1474
    %v1490 = vcombine.low %v1481, %v1488
    %v1492 = vunpack.c.l.s4 1966171168
    %v1493 = vunpack.c.0.s8 %v1492
    %v1494 = vlaneseq
    %v1495 = vshrl.u32 %v1494, 7
    %v1496 = vsub.s32 %v1493, %v1495
    %v1497 = vrot.slane %v1489, %v1496
    %v1499 = vunpack.c.l.s4 1966171168
    %v1500 = vunpack.c.0.s8 %v1499
    %v1501 = vlaneseq
    %v1502 = vshrl.u32 %v1501, 7
    %v1503 = vsub.s32 %v1500, %v1502
    %v1504 = vrot.slane %v1490, %v1503
    %v1505 = vcombine.low %v1497, %v1504
    %1509 = vst [vmem:[%s3] sm:$0xff] %v1407
    %1510 = vst [vmem:[%s3 + $0x8] sm:$0xff] %v1456
    %1511 = vst [vmem:[%s3 + $0x10] sm:$0xff] %v1505
    // Predicated region
    $region22: #{_forward_impl.2} parent=1 // pred_check
      _
    $region23: #{_forward_impl.2} parent=1 // pred_check_branch
      %1513 = sbr.rel (0) target = $region25
    $region24: #{_forward_impl.2} parent=1 // pred_region
      _
    $region25: #{_forward_impl.2} parent=1 // pred_fallthru
      _
    // Predicated region
    $region26: #{_forward_impl.2} parent=1 // pred_check
      _
    $region27: #{_forward_impl.2} parent=1 // pred_check_branch
      %1515 = sbr.rel (0) target = $region29
    $region28: #{_forward_impl.2} parent=1 // pred_region
      _
    $region29: #{_forward_impl.2} parent=1 // pred_fallthru
      _
    %1516 = vsyncpa [#allocation3], 1
    %1517 = vsyncpa [#allocation5], 1

// kernel: _forward_impl.3
$region0: #{_forward_impl.3}
  #allocation0 [shape = 'u32[]', space=smem, size = 0x4, offset = 0x4, fixed_abs, tag = 'smem constant byte address 0x4 - core index']
  #allocation1 [shape = 'u32[144,128]{1,0:T(1,128)}', space=vmem, size = 0x12000, scoped, tag = 'internal scratch']
  %s0 = inlined_call_operand.vmem [shape: f32[6,96], index: 0, kind: input, shape index: {}]
  %s1 = inlined_call_operand.vmem [shape: f32[24,1024], index: 1, kind: input, shape index: {}]
  %s2 = inlined_call_operand.vmem [shape: f32[3,1024], index: 2, kind: input, shape index: {}]
  %s3 = inlined_call_operand.vmem [shape: f32[6,1024], index: 3, kind: output, shape index: {}]
  %s4 = sld [smem:[#allocation0]]
  $region22: #{_forward_impl.3} parent=0
    _
  %s6 = ssub.s32 1, %s4
  %s7 = scalar_select 0, %s6, %s4
  // Predicated region
  $region2: #{_forward_impl.3} parent=0 // pred_check
    _
  $region3: #{_forward_impl.3} parent=0 // pred_check_branch
    %9 = sbr.rel (0) target = $region5
  $region4: #{_forward_impl.3} parent=0 // pred_region
    _
  $region5: #{_forward_impl.3} parent=0 // pred_fallthru
    _
  // Predicated region
  $region6: #{_forward_impl.3} parent=0 // pred_check
    _
  $region7: #{_forward_impl.3} parent=0 // pred_check_branch
    %11 = sbr.rel (0) target = $region9
  $region8: #{_forward_impl.3} parent=0 // pred_region
    _
  $region9: #{_forward_impl.3} parent=0 // pred_fallthru
    _
  // Predicated region
  $region10: #{_forward_impl.3} parent=0 // pred_check
    _
  $region11: #{_forward_impl.3} parent=0 // pred_check_branch
    %13 = sbr.rel (0) target = $region13
  $region12: #{_forward_impl.3} parent=0 // pred_region
    _
  $region13: #{_forward_impl.3} parent=0 // pred_fallthru
    _
  %v14 = vld [vmem:[%s1] sm:$0xff]
  %v15 = vld [vmem:[%s1 + $0x8] sm:$0xff]
  %v16 = vld [vmem:[%s1 + $0x10] sm:$0xff]
  %v17 = vld [vmem:[%s1 + $0x18] sm:$0xff]
  %v18 = vld [vmem:[%s1 + $0x20] sm:$0xff]
  %v19 = vld [vmem:[%s1 + $0x28] sm:$0xff]
  %v20 = vld [vmem:[%s1 + $0x30] sm:$0xff]
  %v21 = vld [vmem:[%s1 + $0x38] sm:$0xff]
  %v22 = vld [vmem:[%s1 + $0x40] sm:$0xff]
  %v23 = vld [vmem:[%s1 + $0x48] sm:$0xff]
  %v24 = vld [vmem:[%s1 + $0x50] sm:$0xff]
  %v25 = vld [vmem:[%s1 + $0x58] sm:$0xff]
  %v26 = vld [vmem:[%s1 + $0x60] sm:$0xff]
  %v27 = vld [vmem:[%s1 + $0x68] sm:$0xff]
  %v28 = vld [vmem:[%s1 + $0x70] sm:$0xff]
  %v29 = vld [vmem:[%s1 + $0x78] sm:$0xff]
  %v30 = vld [vmem:[%s1 + $0x80] sm:$0xff]
  %v31 = vld [vmem:[%s1 + $0x88] sm:$0xff]
  %v32 = vld [vmem:[%s1 + $0x90] sm:$0xff]
  %v33 = vld [vmem:[%s1 + $0x98] sm:$0xff]
  %v34 = vld [vmem:[%s1 + $0xa0] sm:$0xff]
  %v35 = vld [vmem:[%s1 + $0xa8] sm:$0xff]
  %v36 = vld [vmem:[%s1 + $0xb0] sm:$0xff]
  %v37 = vld [vmem:[%s1 + $0xb8] sm:$0xff]
  %v38 = vld [vmem:[%s2] ss:$4 sm:$0xff]
  %v40 = vlaneseq
  %v41 = vshrl.u32 %v40, 7
  %v42 = vsub.s32 0, %v41
  %v43 = vrot.slane %v38, %v42
  %v44 = vlaneseq
  %v45 = vshrl.u32 %v44, 7
  %v46 = vsub.s32 1, %v45
  %v47 = vrot.slane %v38, %v46
  %v48 = vlaneseq
  %v49 = vshrl.u32 %v48, 7
  %v50 = vsub.s32 2, %v49
  %v51 = vrot.slane %v38, %v50
  %v52 = vlaneseq
  %v53 = vshrl.u32 %v52, 7
  %v54 = vsub.s32 3, %v53
  %v55 = vrot.slane %v38, %v54
  %v56 = vlaneseq
  %v57 = vshrl.u32 %v56, 7
  %v58 = vsub.s32 4, %v57
  %v59 = vrot.slane %v38, %v58
  %v60 = vlaneseq
  %v61 = vshrl.u32 %v60, 7
  %v62 = vsub.s32 5, %v61
  %v63 = vrot.slane %v38, %v62
  %v64 = vlaneseq
  %v65 = vshrl.u32 %v64, 7
  %v66 = vsub.s32 6, %v65
  %v67 = vrot.slane %v38, %v66
  %v68 = vlaneseq
  %v69 = vshrl.u32 %v68, 7
  %v70 = vsub.s32 7, %v69
  %v71 = vrot.slane %v38, %v70
  %v80 = vmul.f32 %v14, %v43
  %v81 = vmul.f32 %v15, %v47
  %v82 = vmul.f32 %v16, %v51
  %v83 = vmul.f32 %v17, %v55
  %v84 = vmul.f32 %v18, %v59
  %v85 = vmul.f32 %v19, %v63
  %v86 = vmul.f32 %v20, %v67
  %v87 = vmul.f32 %v21, %v71
  %v88 = vmul.f32 %v22, %v43
  %v89 = vmul.f32 %v23, %v47
  %v90 = vmul.f32 %v24, %v51
  %v91 = vmul.f32 %v25, %v55
  %v92 = vmul.f32 %v26, %v59
  %v93 = vmul.f32 %v27, %v63
  %v94 = vmul.f32 %v28, %v67
  %v95 = vmul.f32 %v29, %v71
  %v96 = vmul.f32 %v30, %v43
  %v97 = vmul.f32 %v31, %v47
  %v98 = vmul.f32 %v32, %v51
  %v99 = vmul.f32 %v33, %v55
  %v100 = vmul.f32 %v34, %v59
  %v101 = vmul.f32 %v35, %v63
  %v102 = vmul.f32 %v36, %v67
  %v103 = vmul.f32 %v37, %v71
  %s104 = scalar_lea.vmem %s2, 1
  %v105 = vld [vmem:[%s104] ss:$4 sm:$0xff]
  %v107 = vlaneseq
  %v108 = vshrl.u32 %v107, 7
  %v109 = vsub.s32 0, %v108
  %v110 = vrot.slane %v105, %v109
  %v111 = vlaneseq
  %v112 = vshrl.u32 %v111, 7
  %v113 = vsub.s32 1, %v112
  %v114 = vrot.slane %v105, %v113
  %v115 = vlaneseq
  %v116 = vshrl.u32 %v115, 7
  %v117 = vsub.s32 2, %v116
  %v118 = vrot.slane %v105, %v117
  %v119 = vlaneseq
  %v120 = vshrl.u32 %v119, 7
  %v121 = vsub.s32 3, %v120
  %v122 = vrot.slane %v105, %v121
  %v123 = vlaneseq
  %v124 = vshrl.u32 %v123, 7
  %v125 = vsub.s32 4, %v124
  %v126 = vrot.slane %v105, %v125
  %v127 = vlaneseq
  %v128 = vshrl.u32 %v127, 7
  %v129 = vsub.s32 5, %v128
  %v130 = vrot.slane %v105, %v129
  %v131 = vlaneseq
  %v132 = vshrl.u32 %v131, 7
  %v133 = vsub.s32 6, %v132
  %v134 = vrot.slane %v105, %v133
  %v135 = vlaneseq
  %v136 = vshrl.u32 %v135, 7
  %v137 = vsub.s32 7, %v136
  %v138 = vrot.slane %v105, %v137
  %v147 = vmul.f32 %v14, %v110
  %v148 = vmul.f32 %v15, %v114
  %v149 = vmul.f32 %v16, %v118
  %v150 = vmul.f32 %v17, %v122
  %v151 = vmul.f32 %v18, %v126
  %v152 = vmul.f32 %v19, %v130
  %v153 = vmul.f32 %v20, %v134
  %v154 = vmul.f32 %v21, %v138
  %v155 = vmul.f32 %v22, %v110
  %v156 = vmul.f32 %v23, %v114
  %v157 = vmul.f32 %v24, %v118
  %v158 = vmul.f32 %v25, %v122
  %v159 = vmul.f32 %v26, %v126
  %v160 = vmul.f32 %v27, %v130
  %v161 = vmul.f32 %v28, %v134
  %v162 = vmul.f32 %v29, %v138
  %v163 = vmul.f32 %v30, %v110
  %v164 = vmul.f32 %v31, %v114
  %v165 = vmul.f32 %v32, %v118
  %v166 = vmul.f32 %v33, %v122
  %v167 = vmul.f32 %v34, %v126
  %v168 = vmul.f32 %v35, %v130
  %v169 = vmul.f32 %v36, %v134
  %v170 = vmul.f32 %v37, %v138
  %s171 = scalar_lea.vmem %s2, 2
  %v172 = vld [vmem:[%s171] ss:$4 sm:$0xff]
  %v174 = vlaneseq
  %v175 = vshrl.u32 %v174, 7
  %v176 = vsub.s32 0, %v175
  %v177 = vrot.slane %v172, %v176
  %v178 = vlaneseq
  %v179 = vshrl.u32 %v178, 7
  %v180 = vsub.s32 1, %v179
  %v181 = vrot.slane %v172, %v180
  %v182 = vlaneseq
  %v183 = vshrl.u32 %v182, 7
  %v184 = vsub.s32 2, %v183
  %v185 = vrot.slane %v172, %v184
  %v186 = vlaneseq
  %v187 = vshrl.u32 %v186, 7
  %v188 = vsub.s32 3, %v187
  %v189 = vrot.slane %v172, %v188
  %v190 = vlaneseq
  %v191 = vshrl.u32 %v190, 7
  %v192 = vsub.s32 4, %v191
  %v193 = vrot.slane %v172, %v192
  %v194 = vlaneseq
  %v195 = vshrl.u32 %v194, 7
  %v196 = vsub.s32 5, %v195
  %v197 = vrot.slane %v172, %v196
  %v198 = vlaneseq
  %v199 = vshrl.u32 %v198, 7
  %v200 = vsub.s32 6, %v199
  %v201 = vrot.slane %v172, %v200
  %v202 = vlaneseq
  %v203 = vshrl.u32 %v202, 7
  %v204 = vsub.s32 7, %v203
  %v205 = vrot.slane %v172, %v204
  %v214 = vmul.f32 %v14, %v177
  %v215 = vmul.f32 %v15, %v181
  %v216 = vmul.f32 %v16, %v185
  %v217 = vmul.f32 %v17, %v189
  %v218 = vmul.f32 %v18, %v193
  %v219 = vmul.f32 %v19, %v197
  %v220 = vmul.f32 %v20, %v201
  %v221 = vmul.f32 %v21, %v205
  %v222 = vmul.f32 %v22, %v177
  %v223 = vmul.f32 %v23, %v181
  %v224 = vmul.f32 %v24, %v185
  %v225 = vmul.f32 %v25, %v189
  %v226 = vmul.f32 %v26, %v193
  %v227 = vmul.f32 %v27, %v197
  %v228 = vmul.f32 %v28, %v201
  %v229 = vmul.f32 %v29, %v205
  %v230 = vmul.f32 %v30, %v177
  %v231 = vmul.f32 %v31, %v181
  %v232 = vmul.f32 %v32, %v185
  %v233 = vmul.f32 %v33, %v189
  %v234 = vmul.f32 %v34, %v193
  %v235 = vmul.f32 %v35, %v197
  %v236 = vmul.f32 %v36, %v201
  %v237 = vmul.f32 %v37, %v205
  %v238 = vld [vmem:[%s0] sm:$0x3f]
  %vm239 = vcmask 785408
  %v241 = vsel %vm239, %v238, 0
  %243 = vmatprep.subr.mxu0 0.0
  %244 = vmatpush1.msra.mxu0 0.0
  %245 = vmatprep.subr.mxu0 0.0
  %246 = vmatpush1.msra.mxu0 0.0
  %247 = vmatprep.subr.mxu0 0.0
  %248 = vmatpush1.msra.mxu0 0.0
  %249 = vmatprep.subr.mxu0 0.0
  %250 = vmatpush1.msra.mxu0 0.0
  %251 = vmatprep.subr.mxu0 %v31
  %252 = vmatpush1.msra.mxu0 %v30
  %253 = vmatprep.subr.mxu0 %v23
  %254 = vmatpush1.msra.mxu0 %v22
  %255 = vmatprep.subr.mxu0 %v15
  %256 = vmatpush1.msra.mxu0 %v14
  %257 = vmatprep.subr.mxu0 %v231
  %258 = vmatpush1.msra.mxu0 %v230
  %259 = vmatprep.subr.mxu0 %v223
  %260 = vmatpush1.msra.mxu0 %v222
  %261 = vmatprep.subr.mxu0 %v215
  %262 = vmatpush1.msra.mxu0 %v214
  %263 = vmatprep.subr.mxu0 %v164
  %264 = vmatpush1.msra.mxu0 %v163
  %265 = vmatprep.subr.mxu0 %v156
  %266 = vmatpush1.msra.mxu0 %v155
  %267 = vmatprep.subr.mxu0 %v148
  %268 = vmatpush1.msra.mxu0 %v147
  %269 = vmatprep.subr.mxu0 %v97
  %270 = vmatpush1.msra.mxu0 %v96
  %271 = vmatprep.subr.mxu0 %v89
  %272 = vmatpush1.msra.mxu0 %v88
  %273 = vmatprep.subr.mxu0 %v81
  %274 = vmatpush1.msra.mxu0 %v80
  %275 = vmatprep.subr.mxu0 0.0
  %276 = vmatpush2.msra.mxu0 0.0
  %277 = vmatprep.subr.mxu0 0.0
  %278 = vmatpush2.msra.mxu0 0.0
  %279 = vmatprep.subr.mxu0 0.0
  %280 = vmatpush2.msra.mxu0 0.0
  %281 = vmatprep.subr.mxu0 0.0
  %282 = vmatpush2.msra.mxu0 0.0
  %283 = vmatprep.subr.mxu0 0.0
  %284 = vmatpush2.msra.mxu0 0.0
  %285 = vmatprep.subr.mxu0 0.0
  %286 = vmatpush2.msra.mxu0 0.0
  %287 = vmatprep.subr.mxu0 0.0
  %288 = vmatpush2.msra.mxu0 0.0
  %289 = vmatprep.subr.mxu0 0.0
  %290 = vmatpush2.msra.mxu0 0.0
  %291 = vmatprep.subr.mxu0 0.0
  %292 = vmatpush2.msra.mxu0 0.0
  %293 = vmatprep.subr.mxu0 0.0
  %294 = vmatpush2.msra.mxu0 0.0
  %295 = vmatprep.subr.mxu0 0.0
  %296 = vmatpush2.msra.mxu0 0.0
  %297 = vmatprep.subr.mxu0 0.0
  %298 = vmatpush2.msra.mxu0 0.0
  %299 = vmatprep.subr.mxu0 0.0
  %300 = vmatpush2.msra.mxu0 0.0
  %301 = vmatprep.subr.mxu0 0.0
  %302 = vmatpush2.msra.mxu0 0.0
  %303 = vmatprep.subr.mxu0 0.0
  %304 = vmatpush2.msra.mxu0 0.0
  %305 = vmatprep.subr.mxu0 0.0
  %306 = vmatpush2.msra.mxu0 0.0
  %307 = vmatprep.mubr.f32.mxu0 0.0
  %308 = vmatmul.mubr.f32.gmra.mxu0 %v241
  %v309 = vpop.f32.mrf.mxu0
  %v310 = vadd.f32 0.0, %v309
  %v311 = vpop.f32.mrf.mxu0
  %v312 = vadd.f32 0.0, %v311
  %313 = vdwg.mxu0
  %314 = vmatprep.subr.mxu0 0.0
  %315 = vmatpush1.msra.mxu0 0.0
  %316 = vmatprep.subr.mxu0 0.0
  %317 = vmatpush1.msra.mxu0 0.0
  %318 = vmatprep.subr.mxu0 0.0
  %319 = vmatpush1.msra.mxu0 0.0
  %320 = vmatprep.subr.mxu0 0.0
  %321 = vmatpush1.msra.mxu0 0.0
  %322 = vmatprep.subr.mxu0 %v33
  %323 = vmatpush1.msra.mxu0 %v32
  %324 = vmatprep.subr.mxu0 %v25
  %325 = vmatpush1.msra.mxu0 %v24
  %326 = vmatprep.subr.mxu0 %v17
  %327 = vmatpush1.msra.mxu0 %v16
  %328 = vmatprep.subr.mxu0 %v233
  %329 = vmatpush1.msra.mxu0 %v232
  %330 = vmatprep.subr.mxu0 %v225
  %331 = vmatpush1.msra.mxu0 %v224
  %332 = vmatprep.subr.mxu0 %v217
  %333 = vmatpush1.msra.mxu0 %v216
  %334 = vmatprep.subr.mxu0 %v166
  %335 = vmatpush1.msra.mxu0 %v165
  %336 = vmatprep.subr.mxu0 %v158
  %337 = vmatpush1.msra.mxu0 %v157
  %338 = vmatprep.subr.mxu0 %v150
  %339 = vmatpush1.msra.mxu0 %v149
  %340 = vmatprep.subr.mxu0 %v99
  %341 = vmatpush1.msra.mxu0 %v98
  %342 = vmatprep.subr.mxu0 %v91
  %343 = vmatpush1.msra.mxu0 %v90
  %344 = vmatprep.subr.mxu0 %v83
  %345 = vmatpush1.msra.mxu0 %v82
  %346 = vmatprep.subr.mxu0 0.0
  %347 = vmatpush2.msra.mxu0 0.0
  %348 = vmatprep.subr.mxu0 0.0
  %349 = vmatpush2.msra.mxu0 0.0
  %350 = vmatprep.subr.mxu0 0.0
  %351 = vmatpush2.msra.mxu0 0.0
  %352 = vmatprep.subr.mxu0 0.0
  %353 = vmatpush2.msra.mxu0 0.0
  %354 = vmatprep.subr.mxu0 0.0
  %355 = vmatpush2.msra.mxu0 0.0
  %356 = vmatprep.subr.mxu0 0.0
  %357 = vmatpush2.msra.mxu0 0.0
  %358 = vmatprep.subr.mxu0 0.0
  %359 = vmatpush2.msra.mxu0 0.0
  %360 = vmatprep.subr.mxu0 0.0
  %361 = vmatpush2.msra.mxu0 0.0
  %362 = vmatprep.subr.mxu0 0.0
  %363 = vmatpush2.msra.mxu0 0.0
  %364 = vmatprep.subr.mxu0 0.0
  %365 = vmatpush2.msra.mxu0 0.0
  %366 = vmatprep.subr.mxu0 0.0
  %367 = vmatpush2.msra.mxu0 0.0
  %368 = vmatprep.subr.mxu0 0.0
  %369 = vmatpush2.msra.mxu0 0.0
  %370 = vmatprep.subr.mxu0 0.0
  %371 = vmatpush2.msra.mxu0 0.0
  %372 = vmatprep.subr.mxu0 0.0
  %373 = vmatpush2.msra.mxu0 0.0
  %374 = vmatprep.subr.mxu0 0.0
  %375 = vmatpush2.msra.mxu0 0.0
  %376 = vmatprep.subr.mxu0 0.0
  %377 = vmatpush2.msra.mxu0 0.0
  %378 = vmatprep.mubr.f32.mxu0 0.0
  %379 = vmatmul.mubr.f32.gmra.mxu0 %v241
  %v380 = vpop.f32.mrf.mxu0
  %v381 = vadd.f32 0.0, %v380
  %v382 = vpop.f32.mrf.mxu0
  %v383 = vadd.f32 0.0, %v382
  %384 = vdwg.mxu0
  %385 = vmatprep.subr.mxu0 0.0
  %386 = vmatpush1.msra.mxu0 0.0
  %387 = vmatprep.subr.mxu0 0.0
  %388 = vmatpush1.msra.mxu0 0.0
  %389 = vmatprep.subr.mxu0 0.0
  %390 = vmatpush1.msra.mxu0 0.0
  %391 = vmatprep.subr.mxu0 0.0
  %392 = vmatpush1.msra.mxu0 0.0
  %393 = vmatprep.subr.mxu0 %v35
  %394 = vmatpush1.msra.mxu0 %v34
  %395 = vmatprep.subr.mxu0 %v27
  %396 = vmatpush1.msra.mxu0 %v26
  %397 = vmatprep.subr.mxu0 %v19
  %398 = vmatpush1.msra.mxu0 %v18
  %399 = vmatprep.subr.mxu0 %v235
  %400 = vmatpush1.msra.mxu0 %v234
  %401 = vmatprep.subr.mxu0 %v227
  %402 = vmatpush1.msra.mxu0 %v226
  %403 = vmatprep.subr.mxu0 %v219
  %404 = vmatpush1.msra.mxu0 %v218
  %405 = vmatprep.subr.mxu0 %v168
  %406 = vmatpush1.msra.mxu0 %v167
  %407 = vmatprep.subr.mxu0 %v160
  %408 = vmatpush1.msra.mxu0 %v159
  %409 = vmatprep.subr.mxu0 %v152
  %410 = vmatpush1.msra.mxu0 %v151
  %411 = vmatprep.subr.mxu0 %v101
  %412 = vmatpush1.msra.mxu0 %v100
  %413 = vmatprep.subr.mxu0 %v93
  %414 = vmatpush1.msra.mxu0 %v92
  %415 = vmatprep.subr.mxu0 %v85
  %416 = vmatpush1.msra.mxu0 %v84
  %417 = vmatprep.subr.mxu0 0.0
  %418 = vmatpush2.msra.mxu0 0.0
  %419 = vmatprep.subr.mxu0 0.0
  %420 = vmatpush2.msra.mxu0 0.0
  %421 = vmatprep.subr.mxu0 0.0
  %422 = vmatpush2.msra.mxu0 0.0
  %423 = vmatprep.subr.mxu0 0.0
  %424 = vmatpush2.msra.mxu0 0.0
  %425 = vmatprep.subr.mxu0 0.0
  %426 = vmatpush2.msra.mxu0 0.0
  %427 = vmatprep.subr.mxu0 0.0
  %428 = vmatpush2.msra.mxu0 0.0
  %429 = vmatprep.subr.mxu0 0.0
  %430 = vmatpush2.msra.mxu0 0.0
  %431 = vmatprep.subr.mxu0 0.0
  %432 = vmatpush2.msra.mxu0 0.0
  %433 = vmatprep.subr.mxu0 0.0
  %434 = vmatpush2.msra.mxu0 0.0
  %435 = vmatprep.subr.mxu0 0.0
  %436 = vmatpush2.msra.mxu0 0.0
  %437 = vmatprep.subr.mxu0 0.0
  %438 = vmatpush2.msra.mxu0 0.0
  %439 = vmatprep.subr.mxu0 0.0
  %440 = vmatpush2.msra.mxu0 0.0
  %441 = vmatprep.subr.mxu0 0.0
  %442 = vmatpush2.msra.mxu0 0.0
  %443 = vmatprep.subr.mxu0 0.0
  %444 = vmatpush2.msra.mxu0 0.0
  %445 = vmatprep.subr.mxu0 0.0
  %446 = vmatpush2.msra.mxu0 0.0
  %447 = vmatprep.subr.mxu0 0.0
  %448 = vmatpush2.msra.mxu0 0.0
  %449 = vmatprep.mubr.f32.mxu0 0.0
  %450 = vmatmul.mubr.f32.gmra.mxu0 %v241
  %v451 = vpop.f32.mrf.mxu0
  %v452 = vadd.f32 0.0, %v451
  %v453 = vpop.f32.mrf.mxu0
  %v454 = vadd.f32 0.0, %v453
  %455 = vdwg.mxu0
  %456 = vmatprep.subr.mxu0 0.0
  %457 = vmatpush1.msra.mxu0 0.0
  %458 = vmatprep.subr.mxu0 0.0
  %459 = vmatpush1.msra.mxu0 0.0
  %460 = vmatprep.subr.mxu0 0.0
  %461 = vmatpush1.msra.mxu0 0.0
  %462 = vmatprep.subr.mxu0 0.0
  %463 = vmatpush1.msra.mxu0 0.0
  %464 = vmatprep.subr.mxu0 %v37
  %465 = vmatpush1.msra.mxu0 %v36
  %466 = vmatprep.subr.mxu0 %v29
  %467 = vmatpush1.msra.mxu0 %v28
  %468 = vmatprep.subr.mxu0 %v21
  %469 = vmatpush1.msra.mxu0 %v20
  %470 = vmatprep.subr.mxu0 %v237
  %471 = vmatpush1.msra.mxu0 %v236
  %472 = vmatprep.subr.mxu0 %v229
  %473 = vmatpush1.msra.mxu0 %v228
  %474 = vmatprep.subr.mxu0 %v221
  %475 = vmatpush1.msra.mxu0 %v220
  %476 = vmatprep.subr.mxu0 %v170
  %477 = vmatpush1.msra.mxu0 %v169
  %478 = vmatprep.subr.mxu0 %v162
  %479 = vmatpush1.msra.mxu0 %v161
  %480 = vmatprep.subr.mxu0 %v154
  %481 = vmatpush1.msra.mxu0 %v153
  %482 = vmatprep.subr.mxu0 %v103
  %483 = vmatpush1.msra.mxu0 %v102
  %484 = vmatprep.subr.mxu0 %v95
  %485 = vmatpush1.msra.mxu0 %v94
  %486 = vmatprep.subr.mxu0 %v87
  %487 = vmatpush1.msra.mxu0 %v86
  %488 = vmatprep.subr.mxu0 0.0
  %489 = vmatpush2.msra.mxu0 0.0
  %490 = vmatprep.subr.mxu0 0.0
  %491 = vmatpush2.msra.mxu0 0.0
  %492 = vmatprep.subr.mxu0 0.0
  %493 = vmatpush2.msra.mxu0 0.0
  %494 = vmatprep.subr.mxu0 0.0
  %495 = vmatpush2.msra.mxu0 0.0
  %496 = vmatprep.subr.mxu0 0.0
  %497 = vmatpush2.msra.mxu0 0.0
  %498 = vmatprep.subr.mxu0 0.0
  %499 = vmatpush2.msra.mxu0 0.0
  %500 = vmatprep.subr.mxu0 0.0
  %501 = vmatpush2.msra.mxu0 0.0
  %502 = vmatprep.subr.mxu0 0.0
  %503 = vmatpush2.msra.mxu0 0.0
  %504 = vmatprep.subr.mxu0 0.0
  %505 = vmatpush2.msra.mxu0 0.0
  %506 = vmatprep.subr.mxu0 0.0
  %507 = vmatpush2.msra.mxu0 0.0
  %508 = vmatprep.subr.mxu0 0.0
  %509 = vmatpush2.msra.mxu0 0.0
  %510 = vmatprep.subr.mxu0 0.0
  %511 = vmatpush2.msra.mxu0 0.0
  %512 = vmatprep.subr.mxu0 0.0
  %513 = vmatpush2.msra.mxu0 0.0
  %514 = vmatprep.subr.mxu0 0.0
  %515 = vmatpush2.msra.mxu0 0.0
  %516 = vmatprep.subr.mxu0 0.0
  %517 = vmatpush2.msra.mxu0 0.0
  %518 = vmatprep.subr.mxu0 0.0
  %519 = vmatpush2.msra.mxu0 0.0
  %520 = vmatprep.mubr.f32.mxu0 0.0
  %521 = vmatmul.mubr.f32.gmra.mxu0 %v241
  %v522 = vpop.f32.mrf.mxu0
  %v523 = vadd.f32 0.0, %v522
  %v524 = vpop.f32.mrf.mxu0
  %v525 = vadd.f32 0.0, %v524
  %526 = vdwg.mxu0
  %527 = vst [vmem:[%s3] sm:$0x3f] %v310
  %528 = vst [vmem:[%s3 + $0x8] sm:$0x3f] %v312
  %529 = vst [vmem:[%s3 + $0x10] sm:$0x3f] %v381
  %530 = vst [vmem:[%s3 + $0x18] sm:$0x3f] %v383
  %531 = vst [vmem:[%s3 + $0x20] sm:$0x3f] %v452
  %532 = vst [vmem:[%s3 + $0x28] sm:$0x3f] %v454
  %533 = vst [vmem:[%s3 + $0x30] sm:$0x3f] %v523
  %534 = vst [vmem:[%s3 + $0x38] sm:$0x3f] %v525
  // Predicated region
  $region14: #{_forward_impl.3} parent=0 // pred_check
    _
  $region15: #{_forward_impl.3} parent=0 // pred_check_branch
    %536 = sbr.rel (0) target = $region17
  $region16: #{_forward_impl.3} parent=0 // pred_region
    _
  $region17: #{_forward_impl.3} parent=0 // pred_fallthru
    _
  // Predicated region
  $region18: #{_forward_impl.3} parent=0 // pred_check
    _
  $region19: #{_forward_impl.3} parent=0 // pred_check_branch
    %538 = sbr.rel (0) target = $region21
  $region20: #{_forward_impl.3} parent=0 // pred_region
    _
  $region21: #{_forward_impl.3} parent=0 // pred_fallthru
    _

</llo_original>
